<compile_context>
chip_gen: v7x
topology: tpu7x:2x2x1
jax: 0.10.0
libtpu: 0.0.40
codegen_flags: <defaults>
</compile_context>

<pallas_src>
import numpy as np
import jax
import jax.numpy as jnp
from jax import lax
from jax.experimental import pallas as pl
from jax.experimental.pallas import tpu as pltpu

# ----------------------------------------------------------------------------
# Config consistent with PythiaSeekAttention.__init__
# ----------------------------------------------------------------------------
BATCH = 2
SEQ = 8
HIDDEN = 64
NUM_HEADS = 4
HEAD_SIZE = HIDDEN // NUM_HEADS             # 16
ROTARY_PCT = 0.25
ROTARY_NDIMS = int(HEAD_SIZE * ROTARY_PCT)  # 4
ROT_HALF = ROTARY_NDIMS // 2                # 2
ROTARY_BASE = 10000
MAX_POS = 32
NORM_FACTOR = float(np.sqrt(HEAD_SIZE))     # sqrt(head_size) buffer
INV_NORM = 1.0 / NORM_FACTOR


# ----------------------------------------------------------------------------
# Static row permutation: torch's per-head [q|k|v] interleave  ->
# q|k|v-major, head-contiguous layout [q_h0..q_h3 | k_h0..k_h3 | v_h0..v_h3].
# ----------------------------------------------------------------------------
def _build_qkv_perm():
    heads = np.arange(NUM_HEADS)[:, None] * 3 * HEAD_SIZE
    dims = np.arange(HEAD_SIZE)[None, :]
    q = (heads + dims).reshape(-1)
    k = (heads + HEAD_SIZE + dims).reshape(-1)
    v = (heads + 2 * HEAD_SIZE + dims).reshape(-1)
    return np.concatenate([q, k, v])


_QKV_PERM = _build_qkv_perm()


# ----------------------------------------------------------------------------
# Fused Pallas kernel: QKV linear + rotary + causal attention + dense.
# One program per batch element (grid=(B,), "parallel").
# ----------------------------------------------------------------------------
def _fused_attention_kernel(x_ref, wqkv_ref, wd_ref, rot_ref, bias_ref,
                            mask_ref, o_ref):
    S, H, NH, HS = SEQ, HIDDEN, NUM_HEADS, HEAD_SIZE

    # --- QKV projection (bf16 MXU operands, f32 accumulation) ---------------
    x_bf = x_ref[...].astype(jnp.bfloat16)                       # [S, H]
    qkv = lax.dot_general(x_bf, wqkv_ref[...], (((1,), (1,)), ((), ())),
                          preferred_element_type=jnp.float32)
    qkv = qkv + bias_ref[0:1, :]                                 # [S, 3H] f32

    # --- rotary embedding on the q|k half (first 2H = 128 lanes) ------------
    # rotate_half(x) = [-x[ROT/2:], x[:ROT/2]] on each head's rotary slice.
    # Implemented as two XLU lane rotations of the whole [S, 2H] tile; the
    # sign-folded sin tables are zero outside the rotary columns, so any
    # cross-head leakage from the global roll is multiplied away.
    qk = qkv[:, :2 * H]                                          # [S, 128] f32
    cos = rot_ref[0]                                             # [S, 128]
    sin_fwd = rot_ref[1]   # -sin at the first-half rotary columns, else 0
    sin_bwd = rot_ref[2]   # +sin at the second-half rotary columns, else 0
    roll_fwd = pltpu.roll(qk, shift=2 * H - ROT_HALF, axis=1)    # col c -> x[c+2]
    roll_bwd = pltpu.roll(qk, shift=ROT_HALF, axis=1)            # col c -> x[c-2]
    qk_emb = qk * cos + roll_fwd * sin_fwd + roll_bwd * sin_bwd  # [S, 128] f32

    # --- causal mask + additive attention mask ------------------------------
    row = lax.broadcasted_iota(jnp.int32, (S, S), 0)
    col = lax.broadcasted_iota(jnp.int32, (S, S), 1)
    causal = col <= row
    mask_value = jnp.finfo(jnp.float32).min
    amask = mask_ref[0]                                          # [S, S] f32

    # --- per-head attention, dense projection folded in per head ------------
    acc = jnp.zeros((S, H), jnp.float32)
    for h in range(NH):                       # static, unrolled; every slice
        q = qk_emb[:, h * HS:(h + 1) * HS]    # stays inside one vreg lane range
        k = qk_emb[:, H + h * HS:H + (h + 1) * HS]
        v = qkv[:, 2 * H + h * HS:2 * H + (h + 1) * HS]

        scores = lax.dot_general(q.astype(jnp.bfloat16), k.astype(jnp.bfloat16),
                                 (((1,), (1,)), ((), ())),
                                 preferred_element_type=jnp.float32) * INV_NORM
        scores = jnp.where(causal, scores, mask_value)
        # Clamp guards against overflow to -inf when a large-negative padding
        # mask is added onto an already causally-masked position (softmax
        # result is unchanged for all practical masks).
        scores = jnp.maximum(scores + amask, mask_value)

        # softmax along keys (exact division; like the PyTorch module, a
        # fully-masked row would yield NaN — the causal diagonal prevents it).
        m = jnp.max(scores, axis=-1, keepdims=True)
        p = jnp.exp(scores - m)
        w = p / jnp.sum(p, axis=-1, keepdims=True)

        ctx = jnp.dot(w.astype(jnp.bfloat16), v.astype(jnp.bfloat16),
                      preferred_element_type=jnp.float32)        # [S, HS]
        # out += ctx_h @ Wd^T[h-block]  -> no ctx slab, no concatenates.
        acc = acc + jnp.dot(ctx.astype(jnp.bfloat16), wd_ref[h],
                            preferred_element_type=jnp.float32)  # [S, H]

    # TODO(synk): H=64 < 128 lanes -> masked store; becomes lane-dense at H>=128.
    o_ref[...] = acc + bias_ref[1:2, :H]


# ----------------------------------------------------------------------------
# Forward wrapper (weight permutation / bf16 cast / rotary-table packing).
# In a real model the weight permutation + cast would be done once at load.
# ----------------------------------------------------------------------------
def pythiaseek_attention_forward(hidden_states, attention_mask, position_ids, params):
    B, S, H = hidden_states.shape
    BS = B * S
    NH, HS, ROT = NUM_HEADS, HEAD_SIZE, ROTARY_NDIMS

    # Weights: permute to q|k|v-major layout, cast MXU operands to bf16.
    Wqkv = params["Wqkv"][_QKV_PERM].astype(jnp.bfloat16)             # [3H, H]
    bqkv = params["bqkv"][_QKV_PERM]
    WdT_heads = params["Wd"].T.reshape(NH, HS, H).astype(jnp.bfloat16)  # [NH,HS,H]

    # Both biases packed into a single [2, 3H] f32 DMA.
    bias_packed = jnp.zeros((2, 3 * H), jnp.float32)
    bias_packed = bias_packed.at[0, :].set(bqkv)
    bias_packed = bias_packed.at[1, :H].set(params["bd"])

    x2d = hidden_states.reshape(BS, H)                                 # f32

    # TODO(synk): per-head masks unsupported; head dim of [B,1,S,S] assumed 1.
    mask3 = attention_mask.reshape(B, S, S).astype(jnp.float32)

    # Rotary tables (RotaryEmbedding buffers + torch.gather equivalent), laid
    # out full-width over the q|k columns with the rotate_half sign folded in,
    # packed into ONE [3, BS, 2H] array: [cos | sin_fwd(-) | sin_bwd(+)].
    inv_freq = 1.0 / (ROTARY_BASE ** (
        jnp.arange(0, ROT, 2, dtype=jnp.float32) / ROT))
    t = jnp.arange(MAX_POS, dtype=jnp.float32)
    freqs = t[:, None] * inv_freq[None, :]                     # [MAX_POS, ROT/2]
    emb = jnp.concatenate([freqs, freqs], axis=-1)             # [MAX_POS, ROT]
    cos_rot = jnp.cos(emb)[position_ids].reshape(BS, ROT)
    sin_rot = jnp.sin(emb)[position_ids].reshape(BS, ROT)

    zpass = jnp.zeros((BS, HS - ROT), jnp.float32)
    zhalf = jnp.zeros((BS, ROT_HALF), jnp.float32)
    cos_head = jnp.concatenate([cos_rot, jnp.ones_like(zpass)], axis=-1)
    sinf_head = jnp.concatenate([-sin_rot[:, :ROT_HALF], zhalf, zpass], axis=-1)
    sinb_head = jnp.concatenate([zhalf, sin_rot[:, ROT_HALF:], zpass], axis=-1)
    rot_tables = jnp.stack([jnp.tile(cos_head, (1, 2 * NH)),
                            jnp.tile(sinf_head, (1, 2 * NH)),
                            jnp.tile(sinb_head, (1, 2 * NH))], axis=0)  # [3,BS,2H]

    out2d = pl.pallas_call(
        _fused_attention_kernel,
        out_shape=jax.ShapeDtypeStruct((BS, H), jnp.float32),
        grid=(B,),
        in_specs=[
            pl.BlockSpec((S, H), lambda b: (b, 0)),             # hidden states
            pl.BlockSpec((3 * H, H), lambda b: (0, 0)),         # Wqkv (q|k|v-major, bf16)
            pl.BlockSpec((NH, HS, H), lambda b: (0, 0, 0)),     # Wd^T per-head blocks (bf16)
            pl.BlockSpec((3, S, 2 * H), lambda b: (0, b, 0)),   # packed rotary tables
            pl.BlockSpec((2, 3 * H), lambda b: (0, 0)),         # packed biases
            pl.BlockSpec((1, S, S), lambda b: (b, 0, 0)),       # additive attention mask
        ],
        out_specs=pl.BlockSpec((S, H), lambda b: (b, 0)),
        compiler_params=pltpu.CompilerParams(
            dimension_semantics=("parallel",)),                 # megacore on v7x
    )(x2d, Wqkv, WdT_heads, rot_tables, bias_packed, mask3)

    return out2d.reshape(B, S, H)


# ----------------------------------------------------------------------------
# Pure-JAX f32 reference mirroring the PyTorch module exactly (verification)
# ----------------------------------------------------------------------------
def reference_forward(hidden_states, attention_mask, position_ids, params):
    B, S, H = hidden_states.shape
    Wqkv, bqkv, Wd, bd = params["Wqkv"], params["bqkv"], params["Wd"], params["bd"]
    ROT = ROTARY_NDIMS

    qkv = hidden_states @ Wqkv.T + bqkv
    qkv = qkv.reshape(B, S, NUM_HEADS, 3 * HEAD_SIZE)
    q = jnp.transpose(qkv[..., :HEAD_SIZE], (0, 2, 1, 3))
    k = jnp.transpose(qkv[..., HEAD_SIZE:2 * HEAD_SIZE], (0, 2, 1, 3))
    v = jnp.transpose(qkv[..., 2 * HEAD_SIZE:], (0, 2, 1, 3))

    inv_freq = 1.0 / (ROTARY_BASE ** (
        jnp.arange(0, ROT, 2, dtype=jnp.float32) / ROT))
    t = jnp.arange(MAX_POS, dtype=jnp.float32)
    freqs = jnp.einsum("i,j->ij", t, inv_freq)
    emb = jnp.concatenate([freqs, freqs], axis=-1)
    cos = jnp.cos(emb)[position_ids][:, None]                 # [B, 1, S, ROT]
    sin = jnp.sin(emb)[position_ids][:, None]

    def rotate_half(x):
        return jnp.concatenate([-x[..., ROT // 2:], x[..., :ROT // 2]], axis=-1)

    q_rot, q_pass = q[..., :ROT], q[..., ROT:]
    k_rot, k_pass = k[..., :ROT], k[..., ROT:]
    q_emb = q_rot * cos + rotate_half(q_rot) * sin
    k_emb = k_rot * cos + rotate_half(k_rot) * sin
    q = jnp.concatenate([q_emb, q_pass], axis=-1)
    k = jnp.concatenate([k_emb, k_pass], axis=-1)

    scores = jnp.einsum("bhqd,bhkd->bhqk", q, k) / NORM_FACTOR
    causal = jnp.tril(jnp.ones((S, S), dtype=bool))
    scores = jnp.where(causal, scores, jnp.finfo(jnp.float32).min)
    scores = scores + attention_mask
    w = jax.nn.softmax(scores, axis=-1)
    out = jnp.einsum("bhqk,bhkd->bhqd", w, v)
    out = jnp.transpose(out, (0, 2, 1, 3)).reshape(B, S, H)
    return out @ Wd.T + bd


# ----------------------------------------------------------------------------
# Main
# ----------------------------------------------------------------------------
if __name__ == "__main__":
    key = jax.random.PRNGKey(0)
    k1, k2, k3, k4, k5 = jax.random.split(key, 5)

    params = {
        "Wqkv": 0.02 * jax.random.normal(k1, (3 * HIDDEN, HIDDEN), jnp.float32),
        "bqkv": 0.02 * jax.random.normal(k2, (3 * HIDDEN,), jnp.float32),
        "Wd":   0.02 * jax.random.normal(k3, (HIDDEN, HIDDEN), jnp.float32),
        "bd":   0.02 * jax.random.normal(k4, (HIDDEN,), jnp.float32),
    }

    hidden_states = jax.random.normal(k5, (BATCH, SEQ, HIDDEN), jnp.float32)
    attention_mask = jnp.zeros((BATCH, 1, SEQ, SEQ), jnp.float32)  # all attended
    position_ids = jnp.broadcast_to(jnp.arange(SEQ, dtype=jnp.int32), (BATCH, SEQ))

    fwd = jax.jit(pythiaseek_attention_forward)
    out = fwd(hidden_states, attention_mask, position_ids, params)
    out = jax.block_until_ready(out)

    ref = reference_forward(hidden_states, attention_mask, position_ids, params)
    # Tolerance accounts for bf16 MXU operands (f32 accumulation) vs the pure
    # f32 reference; softmax itself is exact (no approximate reciprocal).
    np.testing.assert_allclose(np.asarray(out), np.asarray(ref),
                               rtol=2e-2, atol=5e-3)
    print("KERNEL_OK")
</pallas_src>

<mosaic_0001>
module attributes {stable_mosaic.version = 11 : i64} {
  func.func @_fused_attention_kernel(%arg0: i32, %arg1: memref<8x64xf32, #tpu.memory_space<vmem>>, %arg2: memref<192x64xbf16, #tpu.memory_space<vmem>>, %arg3: memref<4x16x64xbf16, #tpu.memory_space<vmem>>, %arg4: memref<3x8x128xf32, #tpu.memory_space<vmem>>, %arg5: memref<2x192xf32, #tpu.memory_space<vmem>>, %arg6: memref<1x8x8xf32, #tpu.memory_space<vmem>>, %arg7: memref<8x64xf32, #tpu.memory_space<vmem>>) attributes {dimension_semantics = [#tpu.dimension_semantics<parallel>], iteration_bounds = array<i64: 2>, scalar_prefetch = 0 : i64, scratch_operands = 0 : i64, tpu.core_type = #tpu.core_type<tc>, window_params = [{transform_indices = @transform_0, window_bounds = array<i64: 8, 64>}, {pipeline_mode = #tpu.pipeline_mode<synchronous>, transform_indices = @transform_1, window_bounds = array<i64: 192, 64>}, {pipeline_mode = #tpu.pipeline_mode<synchronous>, transform_indices = @transform_2, window_bounds = array<i64: 4, 16, 64>}, {transform_indices = @transform_3, window_bounds = array<i64: 3, 8, 128>}, {pipeline_mode = #tpu.pipeline_mode<synchronous>, transform_indices = @transform_4, window_bounds = array<i64: 2, 192>}, {transform_indices = @transform_5, window_bounds = array<i64: 1, 8, 8>}, {transform_indices = @transform_6, window_bounds = array<i64: 8, 64>}]} {
    %c0 = arith.constant 0 : index
    %c0_0 = arith.constant 0 : index
    %0 = vector.load %arg1[%c0, %c0_0] : memref<8x64xf32, #tpu.memory_space<vmem>>, vector<8x64xf32>
    %1 = arith.truncf %0 : vector<8x64xf32> to vector<8x64xbf16>
    %c0_1 = arith.constant 0 : index
    %c0_2 = arith.constant 0 : index
    %2 = vector.load %arg2[%c0_1, %c0_2] : memref<192x64xbf16, #tpu.memory_space<vmem>>, vector<192x64xbf16>
    %cst = arith.constant dense<0.000000e+00> : vector<8x192xf32>
    %3 = tpu.matmul %1, %2, %cst {dimension_numbers = #tpu.dot_dimension_numbers<[1], [1], [0], [0], [0, 0, 1, 0], [], []>} : vector<8x64xbf16>, vector<192x64xbf16>, vector<8x192xf32> -> vector<8x192xf32>
    %c0_3 = arith.constant 0 : index
    %c0_4 = arith.constant 0 : index
    %4 = vector.load %arg5[%c0_3, %c0_4] : memref<2x192xf32, #tpu.memory_space<vmem>>, vector<1x192xf32>
    %5 = vector.broadcast %4 : vector<1x192xf32> to vector<8x192xf32>
    %6 = arith.addf %3, %5 : vector<8x192xf32>
    %7 = vector.extract_strided_slice %6 {offsets = [0, 0], sizes = [8, 128], strides = [1, 1]} : vector<8x192xf32> to vector<8x128xf32>
    %c0_5 = arith.constant 0 : index
    %c0_6 = arith.constant 0 : index
    %c0_7 = arith.constant 0 : index
    %8 = vector.load %arg4[%c0_5, %c0_6, %c0_7] : memref<3x8x128xf32, #tpu.memory_space<vmem>>, vector<1x8x128xf32>
    %9 = vector.shape_cast %8 : vector<1x8x128xf32> to vector<8x128xf32>
    %c1 = arith.constant 1 : index
    %c0_8 = arith.constant 0 : index
    %c0_9 = arith.constant 0 : index
    %10 = vector.load %arg4[%c1, %c0_8, %c0_9] : memref<3x8x128xf32, #tpu.memory_space<vmem>>, vector<1x8x128xf32>
    %11 = vector.shape_cast %10 : vector<1x8x128xf32> to vector<8x128xf32>
    %c2 = arith.constant 2 : index
    %c0_10 = arith.constant 0 : index
    %c0_11 = arith.constant 0 : index
    %12 = vector.load %arg4[%c2, %c0_10, %c0_11] : memref<3x8x128xf32, #tpu.memory_space<vmem>>, vector<1x8x128xf32>
    %13 = vector.shape_cast %12 : vector<1x8x128xf32> to vector<8x128xf32>
    %c126_i32 = arith.constant 126 : i32
    %14 = tpu.dynamic_rotate %7 by %c126_i32 dim 1 : vector<8x128xf32>, i32 -> vector<8x128xf32>
    %c2_i32 = arith.constant 2 : i32
    %15 = tpu.dynamic_rotate %7 by %c2_i32 dim 1 : vector<8x128xf32>, i32 -> vector<8x128xf32>
    %16 = arith.mulf %7, %9 : vector<8x128xf32>
    %17 = arith.mulf %14, %11 : vector<8x128xf32>
    %18 = arith.addf %16, %17 : vector<8x128xf32>
    %19 = arith.mulf %15, %13 : vector<8x128xf32>
    %20 = arith.addf %18, %19 : vector<8x128xf32>
    %21 = tpu.iota {dimensions = array<i32: 0>} : vector<8x8xi32>
    %22 = tpu.iota {dimensions = array<i32: 1>} : vector<8x8xi32>
    %23 = arith.cmpi sle, %22, %21 : vector<8x8xi32>
    %c0_12 = arith.constant 0 : index
    %c0_13 = arith.constant 0 : index
    %c0_14 = arith.constant 0 : index
    %24 = vector.load %arg6[%c0_12, %c0_13, %c0_14] : memref<1x8x8xf32, #tpu.memory_space<vmem>>, vector<1x8x8xf32>
    %25 = vector.shape_cast %24 : vector<1x8x8xf32> to vector<8x8xf32>
    %cst_15 = arith.constant 0.000000e+00 : f32
    %26 = vector.broadcast %cst_15 : f32 to vector<8x64xf32>
    %27 = vector.extract_strided_slice %20 {offsets = [0, 0], sizes = [8, 16], strides = [1, 1]} : vector<8x128xf32> to vector<8x16xf32>
    %28 = vector.extract_strided_slice %20 {offsets = [0, 64], sizes = [8, 16], strides = [1, 1]} : vector<8x128xf32> to vector<8x16xf32>
    %29 = vector.extract_strided_slice %6 {offsets = [0, 128], sizes = [8, 16], strides = [1, 1]} : vector<8x192xf32> to vector<8x16xf32>
    %30 = arith.truncf %27 : vector<8x16xf32> to vector<8x16xbf16>
    %31 = arith.truncf %28 : vector<8x16xf32> to vector<8x16xbf16>
    %cst_16 = arith.constant dense<0.000000e+00> : vector<8x8xf32>
    %32 = tpu.matmul %30, %31, %cst_16 {dimension_numbers = #tpu.dot_dimension_numbers<[1], [1], [0], [0], [0, 0, 1, 0], [], []>} : vector<8x16xbf16>, vector<8x16xbf16>, vector<8x8xf32> -> vector<8x8xf32>
    %cst_17 = arith.constant 2.500000e-01 : f32
    %33 = vector.broadcast %cst_17 : f32 to vector<8x8xf32>
    %34 = arith.mulf %32, %33 : vector<8x8xf32>
    %cst_18 = arith.constant -3.40282347E+38 : f32
    %35 = vector.broadcast %cst_18 : f32 to vector<8x8xf32>
    %36 = arith.select %23, %34, %35 : vector<8x8xi1>, vector<8x8xf32>
    %37 = arith.addf %36, %25 : vector<8x8xf32>
    %cst_19 = arith.constant -3.40282347E+38 : f32
    %38 = vector.broadcast %cst_19 : f32 to vector<8x8xf32>
    %39 = arith.maximumf %37, %38 : vector<8x8xf32>
    %cst_20 = arith.constant dense<0xFF800000> : vector<8xf32>
    %40 = vector.multi_reduction <maximumf>, %39, %cst_20 [1] : vector<8x8xf32> to vector<8xf32>
    %41 = vector.shape_cast %40 : vector<8xf32> to vector<8x1xf32>
    %42 = vector.broadcast %41 : vector<8x1xf32> to vector<8x8xf32>
    %43 = arith.subf %39, %42 : vector<8x8xf32>
    %44 = math.exp %43 : vector<8x8xf32>
    %cst_21 = arith.constant dense<0.000000e+00> : vector<8xf32>
    %45 = vector.multi_reduction <add>, %44, %cst_21 [1] : vector<8x8xf32> to vector<8xf32>
    %46 = vector.shape_cast %45 : vector<8xf32> to vector<8x1xf32>
    %47 = vector.broadcast %46 : vector<8x1xf32> to vector<8x8xf32>
    %48 = arith.divf %44, %47 : vector<8x8xf32>
    %49 = arith.truncf %48 : vector<8x8xf32> to vector<8x8xbf16>
    %50 = arith.truncf %29 : vector<8x16xf32> to vector<8x16xbf16>
    %cst_22 = arith.constant dense<0.000000e+00> : vector<8x16xf32>
    %51 = tpu.matmul %49, %50, %cst_22 {dimension_numbers = #tpu.dot_dimension_numbers<[1], [0], [0], [1], [0, 0, 1, 1], [], []>} : vector<8x8xbf16>, vector<8x16xbf16>, vector<8x16xf32> -> vector<8x16xf32>
    %52 = arith.truncf %51 : vector<8x16xf32> to vector<8x16xbf16>
    %c0_23 = arith.constant 0 : index
    %c0_24 = arith.constant 0 : index
    %c0_25 = arith.constant 0 : index
    %53 = vector.load %arg3[%c0_23, %c0_24, %c0_25] : memref<4x16x64xbf16, #tpu.memory_space<vmem>>, vector<1x16x64xbf16>
    %54 = vector.shape_cast %53 : vector<1x16x64xbf16> to vector<16x64xbf16>
    %cst_26 = arith.constant dense<0.000000e+00> : vector<8x64xf32>
    %55 = tpu.matmul %52, %54, %cst_26 {dimension_numbers = #tpu.dot_dimension_numbers<[1], [0], [0], [1], [0, 0, 1, 1], [], []>} : vector<8x16xbf16>, vector<16x64xbf16>, vector<8x64xf32> -> vector<8x64xf32>
    %56 = arith.addf %26, %55 : vector<8x64xf32>
    %57 = vector.extract_strided_slice %20 {offsets = [0, 16], sizes = [8, 16], strides = [1, 1]} : vector<8x128xf32> to vector<8x16xf32>
    %58 = vector.extract_strided_slice %20 {offsets = [0, 80], sizes = [8, 16], strides = [1, 1]} : vector<8x128xf32> to vector<8x16xf32>
    %59 = vector.extract_strided_slice %6 {offsets = [0, 144], sizes = [8, 16], strides = [1, 1]} : vector<8x192xf32> to vector<8x16xf32>
    %60 = arith.truncf %57 : vector<8x16xf32> to vector<8x16xbf16>
    %61 = arith.truncf %58 : vector<8x16xf32> to vector<8x16xbf16>
    %cst_27 = arith.constant dense<0.000000e+00> : vector<8x8xf32>
    %62 = tpu.matmul %60, %61, %cst_27 {dimension_numbers = #tpu.dot_dimension_numbers<[1], [1], [0], [0], [0, 0, 1, 0], [], []>} : vector<8x16xbf16>, vector<8x16xbf16>, vector<8x8xf32> -> vector<8x8xf32>
    %cst_28 = arith.constant 2.500000e-01 : f32
    %63 = vector.broadcast %cst_28 : f32 to vector<8x8xf32>
    %64 = arith.mulf %62, %63 : vector<8x8xf32>
    %cst_29 = arith.constant -3.40282347E+38 : f32
    %65 = vector.broadcast %cst_29 : f32 to vector<8x8xf32>
    %66 = arith.select %23, %64, %65 : vector<8x8xi1>, vector<8x8xf32>
    %67 = arith.addf %66, %25 : vector<8x8xf32>
    %cst_30 = arith.constant -3.40282347E+38 : f32
    %68 = vector.broadcast %cst_30 : f32 to vector<8x8xf32>
    %69 = arith.maximumf %67, %68 : vector<8x8xf32>
    %cst_31 = arith.constant dense<0xFF800000> : vector<8xf32>
    %70 = vector.multi_reduction <maximumf>, %69, %cst_31 [1] : vector<8x8xf32> to vector<8xf32>
    %71 = vector.shape_cast %70 : vector<8xf32> to vector<8x1xf32>
    %72 = vector.broadcast %71 : vector<8x1xf32> to vector<8x8xf32>
    %73 = arith.subf %69, %72 : vector<8x8xf32>
    %74 = math.exp %73 : vector<8x8xf32>
    %cst_32 = arith.constant dense<0.000000e+00> : vector<8xf32>
    %75 = vector.multi_reduction <add>, %74, %cst_32 [1] : vector<8x8xf32> to vector<8xf32>
    %76 = vector.shape_cast %75 : vector<8xf32> to vector<8x1xf32>
    %77 = vector.broadcast %76 : vector<8x1xf32> to vector<8x8xf32>
    %78 = arith.divf %74, %77 : vector<8x8xf32>
    %79 = arith.truncf %78 : vector<8x8xf32> to vector<8x8xbf16>
    %80 = arith.truncf %59 : vector<8x16xf32> to vector<8x16xbf16>
    %cst_33 = arith.constant dense<0.000000e+00> : vector<8x16xf32>
    %81 = tpu.matmul %79, %80, %cst_33 {dimension_numbers = #tpu.dot_dimension_numbers<[1], [0], [0], [1], [0, 0, 1, 1], [], []>} : vector<8x8xbf16>, vector<8x16xbf16>, vector<8x16xf32> -> vector<8x16xf32>
    %82 = arith.truncf %81 : vector<8x16xf32> to vector<8x16xbf16>
    %c1_34 = arith.constant 1 : index
    %c0_35 = arith.constant 0 : index
    %c0_36 = arith.constant 0 : index
    %83 = vector.load %arg3[%c1_34, %c0_35, %c0_36] : memref<4x16x64xbf16, #tpu.memory_space<vmem>>, vector<1x16x64xbf16>
    %84 = vector.shape_cast %83 : vector<1x16x64xbf16> to vector<16x64xbf16>
    %cst_37 = arith.constant dense<0.000000e+00> : vector<8x64xf32>
    %85 = tpu.matmul %82, %84, %cst_37 {dimension_numbers = #tpu.dot_dimension_numbers<[1], [0], [0], [1], [0, 0, 1, 1], [], []>} : vector<8x16xbf16>, vector<16x64xbf16>, vector<8x64xf32> -> vector<8x64xf32>
    %86 = arith.addf %56, %85 : vector<8x64xf32>
    %87 = vector.extract_strided_slice %20 {offsets = [0, 32], sizes = [8, 16], strides = [1, 1]} : vector<8x128xf32> to vector<8x16xf32>
    %88 = vector.extract_strided_slice %20 {offsets = [0, 96], sizes = [8, 16], strides = [1, 1]} : vector<8x128xf32> to vector<8x16xf32>
    %89 = vector.extract_strided_slice %6 {offsets = [0, 160], sizes = [8, 16], strides = [1, 1]} : vector<8x192xf32> to vector<8x16xf32>
    %90 = arith.truncf %87 : vector<8x16xf32> to vector<8x16xbf16>
    %91 = arith.truncf %88 : vector<8x16xf32> to vector<8x16xbf16>
    %cst_38 = arith.constant dense<0.000000e+00> : vector<8x8xf32>
    %92 = tpu.matmul %90, %91, %cst_38 {dimension_numbers = #tpu.dot_dimension_numbers<[1], [1], [0], [0], [0, 0, 1, 0], [], []>} : vector<8x16xbf16>, vector<8x16xbf16>, vector<8x8xf32> -> vector<8x8xf32>
    %cst_39 = arith.constant 2.500000e-01 : f32
    %93 = vector.broadcast %cst_39 : f32 to vector<8x8xf32>
    %94 = arith.mulf %92, %93 : vector<8x8xf32>
    %cst_40 = arith.constant -3.40282347E+38 : f32
    %95 = vector.broadcast %cst_40 : f32 to vector<8x8xf32>
    %96 = arith.select %23, %94, %95 : vector<8x8xi1>, vector<8x8xf32>
    %97 = arith.addf %96, %25 : vector<8x8xf32>
    %cst_41 = arith.constant -3.40282347E+38 : f32
    %98 = vector.broadcast %cst_41 : f32 to vector<8x8xf32>
    %99 = arith.maximumf %97, %98 : vector<8x8xf32>
    %cst_42 = arith.constant dense<0xFF800000> : vector<8xf32>
    %100 = vector.multi_reduction <maximumf>, %99, %cst_42 [1] : vector<8x8xf32> to vector<8xf32>
    %101 = vector.shape_cast %100 : vector<8xf32> to vector<8x1xf32>
    %102 = vector.broadcast %101 : vector<8x1xf32> to vector<8x8xf32>
    %103 = arith.subf %99, %102 : vector<8x8xf32>
    %104 = math.exp %103 : vector<8x8xf32>
    %cst_43 = arith.constant dense<0.000000e+00> : vector<8xf32>
    %105 = vector.multi_reduction <add>, %104, %cst_43 [1] : vector<8x8xf32> to vector<8xf32>
    %106 = vector.shape_cast %105 : vector<8xf32> to vector<8x1xf32>
    %107 = vector.broadcast %106 : vector<8x1xf32> to vector<8x8xf32>
    %108 = arith.divf %104, %107 : vector<8x8xf32>
    %109 = arith.truncf %108 : vector<8x8xf32> to vector<8x8xbf16>
    %110 = arith.truncf %89 : vector<8x16xf32> to vector<8x16xbf16>
    %cst_44 = arith.constant dense<0.000000e+00> : vector<8x16xf32>
    %111 = tpu.matmul %109, %110, %cst_44 {dimension_numbers = #tpu.dot_dimension_numbers<[1], [0], [0], [1], [0, 0, 1, 1], [], []>} : vector<8x8xbf16>, vector<8x16xbf16>, vector<8x16xf32> -> vector<8x16xf32>
    %112 = arith.truncf %111 : vector<8x16xf32> to vector<8x16xbf16>
    %c2_45 = arith.constant 2 : index
    %c0_46 = arith.constant 0 : index
    %c0_47 = arith.constant 0 : index
    %113 = vector.load %arg3[%c2_45, %c0_46, %c0_47] : memref<4x16x64xbf16, #tpu.memory_space<vmem>>, vector<1x16x64xbf16>
    %114 = vector.shape_cast %113 : vector<1x16x64xbf16> to vector<16x64xbf16>
    %cst_48 = arith.constant dense<0.000000e+00> : vector<8x64xf32>
    %115 = tpu.matmul %112, %114, %cst_48 {dimension_numbers = #tpu.dot_dimension_numbers<[1], [0], [0], [1], [0, 0, 1, 1], [], []>} : vector<8x16xbf16>, vector<16x64xbf16>, vector<8x64xf32> -> vector<8x64xf32>
    %116 = arith.addf %86, %115 : vector<8x64xf32>
    %117 = vector.extract_strided_slice %20 {offsets = [0, 48], sizes = [8, 16], strides = [1, 1]} : vector<8x128xf32> to vector<8x16xf32>
    %118 = vector.extract_strided_slice %20 {offsets = [0, 112], sizes = [8, 16], strides = [1, 1]} : vector<8x128xf32> to vector<8x16xf32>
    %119 = vector.extract_strided_slice %6 {offsets = [0, 176], sizes = [8, 16], strides = [1, 1]} : vector<8x192xf32> to vector<8x16xf32>
    %120 = arith.truncf %117 : vector<8x16xf32> to vector<8x16xbf16>
    %121 = arith.truncf %118 : vector<8x16xf32> to vector<8x16xbf16>
    %cst_49 = arith.constant dense<0.000000e+00> : vector<8x8xf32>
    %122 = tpu.matmul %120, %121, %cst_49 {dimension_numbers = #tpu.dot_dimension_numbers<[1], [1], [0], [0], [0, 0, 1, 0], [], []>} : vector<8x16xbf16>, vector<8x16xbf16>, vector<8x8xf32> -> vector<8x8xf32>
    %cst_50 = arith.constant 2.500000e-01 : f32
    %123 = vector.broadcast %cst_50 : f32 to vector<8x8xf32>
    %124 = arith.mulf %122, %123 : vector<8x8xf32>
    %cst_51 = arith.constant -3.40282347E+38 : f32
    %125 = vector.broadcast %cst_51 : f32 to vector<8x8xf32>
    %126 = arith.select %23, %124, %125 : vector<8x8xi1>, vector<8x8xf32>
    %127 = arith.addf %126, %25 : vector<8x8xf32>
    %cst_52 = arith.constant -3.40282347E+38 : f32
    %128 = vector.broadcast %cst_52 : f32 to vector<8x8xf32>
    %129 = arith.maximumf %127, %128 : vector<8x8xf32>
    %cst_53 = arith.constant dense<0xFF800000> : vector<8xf32>
    %130 = vector.multi_reduction <maximumf>, %129, %cst_53 [1] : vector<8x8xf32> to vector<8xf32>
    %131 = vector.shape_cast %130 : vector<8xf32> to vector<8x1xf32>
    %132 = vector.broadcast %131 : vector<8x1xf32> to vector<8x8xf32>
    %133 = arith.subf %129, %132 : vector<8x8xf32>
    %134 = math.exp %133 : vector<8x8xf32>
    %cst_54 = arith.constant dense<0.000000e+00> : vector<8xf32>
    %135 = vector.multi_reduction <add>, %134, %cst_54 [1] : vector<8x8xf32> to vector<8xf32>
    %136 = vector.shape_cast %135 : vector<8xf32> to vector<8x1xf32>
    %137 = vector.broadcast %136 : vector<8x1xf32> to vector<8x8xf32>
    %138 = arith.divf %134, %137 : vector<8x8xf32>
    %139 = arith.truncf %138 : vector<8x8xf32> to vector<8x8xbf16>
    %140 = arith.truncf %119 : vector<8x16xf32> to vector<8x16xbf16>
    %cst_55 = arith.constant dense<0.000000e+00> : vector<8x16xf32>
    %141 = tpu.matmul %139, %140, %cst_55 {dimension_numbers = #tpu.dot_dimension_numbers<[1], [0], [0], [1], [0, 0, 1, 1], [], []>} : vector<8x8xbf16>, vector<8x16xbf16>, vector<8x16xf32> -> vector<8x16xf32>
    %142 = arith.truncf %141 : vector<8x16xf32> to vector<8x16xbf16>
    %c3 = arith.constant 3 : index
    %c0_56 = arith.constant 0 : index
    %c0_57 = arith.constant 0 : index
    %143 = vector.load %arg3[%c3, %c0_56, %c0_57] : memref<4x16x64xbf16, #tpu.memory_space<vmem>>, vector<1x16x64xbf16>
    %144 = vector.shape_cast %143 : vector<1x16x64xbf16> to vector<16x64xbf16>
    %cst_58 = arith.constant dense<0.000000e+00> : vector<8x64xf32>
    %145 = tpu.matmul %142, %144, %cst_58 {dimension_numbers = #tpu.dot_dimension_numbers<[1], [0], [0], [1], [0, 0, 1, 1], [], []>} : vector<8x16xbf16>, vector<16x64xbf16>, vector<8x64xf32> -> vector<8x64xf32>
    %146 = arith.addf %116, %145 : vector<8x64xf32>
    %c1_59 = arith.constant 1 : index
    %c0_60 = arith.constant 0 : index
    %147 = vector.load %arg5[%c1_59, %c0_60] : memref<2x192xf32, #tpu.memory_space<vmem>>, vector<1x64xf32>
    %148 = vector.broadcast %147 : vector<1x64xf32> to vector<8x64xf32>
    %149 = arith.addf %146, %148 : vector<8x64xf32>
    %c0_61 = arith.constant 0 : index
    %c0_62 = arith.constant 0 : index
    %150 = vector.load %arg7[%c0_61, %c0_62] : memref<8x64xf32, #tpu.memory_space<vmem>>, vector<8x64xf32>
    tpu.vector_store %arg7[%c0_61, %c0_62], %149 {strides = array<i32>} : memref<8x64xf32, #tpu.memory_space<vmem>>, vector<8x64xf32>,
    return
  }
  func.func @transform_0(%arg0: i32) -> (i32, i32) {
    %c0_i32 = arith.constant 0 : i32
    %c0_i32_0 = arith.constant 0 : i32
    return %arg0, %c0_i32 : i32, i32
  }
  func.func @transform_1(%arg0: i32) -> (i32, i32) {
    %c0_i32 = arith.constant 0 : i32
    %c0_i32_0 = arith.constant 0 : i32
    %c0_i32_1 = arith.constant 0 : i32
    return %c0_i32, %c0_i32_0 : i32, i32
  }
  func.func @transform_2(%arg0: i32) -> (i32, i32, i32) {
    %c0_i32 = arith.constant 0 : i32
    %c0_i32_0 = arith.constant 0 : i32
    %c0_i32_1 = arith.constant 0 : i32
    %c0_i32_2 = arith.constant 0 : i32
    return %c0_i32, %c0_i32_0, %c0_i32_1 : i32, i32, i32
  }
  func.func @transform_3(%arg0: i32) -> (i32, i32, i32) {
    %c0_i32 = arith.constant 0 : i32
    %c0_i32_0 = arith.constant 0 : i32
    %c0_i32_1 = arith.constant 0 : i32
    return %c0_i32, %arg0, %c0_i32_0 : i32, i32, i32
  }
  func.func @transform_4(%arg0: i32) -> (i32, i32) {
    %c0_i32 = arith.constant 0 : i32
    %c0_i32_0 = arith.constant 0 : i32
    %c0_i32_1 = arith.constant 0 : i32
    return %c0_i32, %c0_i32_0 : i32, i32
  }
  func.func @transform_5(%arg0: i32) -> (i32, i32, i32) {
    %c0_i32 = arith.constant 0 : i32
    %c0_i32_0 = arith.constant 0 : i32
    %c0_i32_1 = arith.constant 0 : i32
    return %arg0, %c0_i32, %c0_i32_0 : i32, i32, i32
  }
  func.func @transform_6(%arg0: i32) -> (i32, i32) {
    %c0_i32 = arith.constant 0 : i32
    %c0_i32_0 = arith.constant 0 : i32
    return %arg0, %c0_i32 : i32, i32
  }
}

</mosaic_0001>

<llo_original>
// kernel: pythiaseek_attention_forward.1
$region0: #{pythiaseek_attention_forward.1}
  #allocation0 [shape = 'u32[]', space=smem, size = 0x4, offset = 0x4, fixed_abs, tag = 'smem constant byte address 0x4 - core index']
  #allocation1 [shape = 'u32[144,128]{1,0:T(1,128)}', space=vmem, size = 0x12000, scoped, tag = 'internal scratch']
  %s0 = inlined_call_operand.vmem [shape: f32[16,64], index: 0, kind: input, shape index: {}]
  %s1 = inlined_call_operand.vmem [shape: bf16[192,64], index: 1, kind: input, shape index: {}]
  %s2 = inlined_call_operand.vmem [shape: bf16[4,16,64], index: 2, kind: input, shape index: {}]
  %s3 = inlined_call_operand.vmem [shape: f32[3,16,128], index: 3, kind: input, shape index: {}]
  %s4 = inlined_call_operand.vmem [shape: f32[2,192], index: 4, kind: input, shape index: {}]
  %s5 = inlined_call_operand.vmem [shape: f32[2,8,8], index: 5, kind: input, shape index: {}]
  %s6 = inlined_call_operand.hbm [shape: f32[16,64], index: 6, kind: output, shape index: {}]
  %s7 = sld [smem:[#allocation0]]
  $region95: #{pythiaseek_attention_forward.1} parent=0
    _
  %s9 = ssub.s32 1, %s7
  %s10 = scalar_select 0, %s9, %s7
  $region1: #{pythiaseek_attention_forward.1} parent=0
    #allocation2 [shape = 'u8[24576]{0}', space=vmem, size = 0x6000, scoped, tag = 'input window, operand 3']
    #allocation3 [shape = 'u8[8192]{0}', space=vmem, size = 0x2000, scoped, tag = 'output window, operand 0']
    #allocation4 [shape = 's32[2]{0}', space=sflag, size = 0x8, scoped, tag = 'scoped memory for pythiaseek_attention_forward.1']
    %11 = vsyncpa [#allocation4], 0
    %s12 = scalar_lea.sflag [#allocation4], 1
    %13 = vsyncpa %s12, 0
    loop: start=0, step=1, limit=4
    $region2: #{pythiaseek_attention_forward.1} parent=1 // loop_pre_header
      _
    $region3: #{pythiaseek_attention_forward.1} parent=1 // loop_header
      %s15 = sphi 0, %s19
      %p16 = scmp.ge.s32.totalorder %s15, 4
      %s25 = sphi 0, %s27
      %s28 = sphi 0, %s25
      %s29 = sphi 0, %s28
      %s45 = sphi 0, %s29
      %s49 = sphi 0, %s49
      %s51 = sphi 0, %s49
      %s52 = sphi 0, %s51
      %s66 = sphi 0, %s52
      %s70 = sphi 0, %s70
      %s72 = sphi 0, %s70
      %s73 = sphi 0, %s72
      %s87 = sphi 0, %s73
      %s93 = sphi 0, %s95
      %s96 = sphi 0, %s93
      %s97 = sphi 0, %s96
      %s113 = sphi 0, %s97
      %s117 = sphi 0, %s117
      %s119 = sphi 0, %s117
      %s120 = sphi 0, %s119
      %s134 = sphi 0, %s120
      %s140 = sphi 0, %s142
      %s143 = sphi 0, %s140
      %s144 = sphi 0, %s143
      %s160 = sphi 0, %s144
      %s166 = sphi 0, %s168
      %s169 = sphi 0, %s166
      %s170 = sphi 0, %s169
      %s186 = sphi 0, %s170
    $region4: #{pythiaseek_attention_forward.1} parent=1 // loop_header_branch
      %18 = sbr.rel (%p16) target = $region8
    $region5: #{pythiaseek_attention_forward.1} parent=1 // loop_body
      %s20 = ssub.s32 %s15, 1
      %s21 = ssub.s32 %s15, 2
      %s22 = sadd.s32 %s15, 1
      %s23 = ssub.s32 %s15, %s22
      %p24 = scmp.eq.s32.totalorder %s23, 0
      %s26 = sadd.s32 %s25, 1
      %s27 = scalar_select %p24, %s25, %s26
      %p30 = pneg %p24
      %p31 = scmp.eq.s32.totalorder %s15, 1
      %p32 = por %p30, %p31
      %p33 = scmp.ne.s32.totalorder %s25, %s28
      %p34 = scmp.eq.s32.totalorder %s15, 0
      %p35 = por %p33, %p34
      %p36 = scmp.ne.s32.totalorder %s25, %s28
      %p37 = scmp.eq.s32.totalorder %s20, 1
      %p38 = por %p36, %p37
      %p39 = scmp.ne.s32.totalorder %s28, %s29
      %p40 = scmp.eq.s32.totalorder %s20, 0
      %p41 = por %p39, %p40
      %p42 = scmp.ne.s32.totalorder %s28, %s29
      %p43 = scmp.eq.s32.totalorder %s21, 1
      %p44 = por %p42, %p43
      %p46 = scmp.ne.s32.totalorder %s29, %s45
      %p47 = scmp.eq.s32.totalorder %s21, 0
      %p48 = por %p46, %p47
      %s50 = sadd.s32 %s49, 1
      %p53 = scmp.eq.s32.totalorder %s15, 1
      %p54 = scmp.ne.s32.totalorder %s49, %s51
      %p55 = scmp.eq.s32.totalorder %s15, 0
      %p56 = por %p54, %p55
      %p57 = scmp.ne.s32.totalorder %s49, %s51
      %p58 = scmp.eq.s32.totalorder %s20, 1
      %p59 = por %p57, %p58
      %p60 = scmp.ne.s32.totalorder %s51, %s52
      %p61 = scmp.eq.s32.totalorder %s20, 0
      %p62 = por %p60, %p61
      %p63 = scmp.ne.s32.totalorder %s51, %s52
      %p64 = scmp.eq.s32.totalorder %s21, 1
      %p65 = por %p63, %p64
      %p67 = scmp.ne.s32.totalorder %s52, %s66
      %p68 = scmp.eq.s32.totalorder %s21, 0
      %p69 = por %p67, %p68
      %s71 = sadd.s32 %s70, 1
      %p74 = scmp.eq.s32.totalorder %s15, 1
      %p75 = scmp.ne.s32.totalorder %s70, %s72
      %p76 = scmp.eq.s32.totalorder %s15, 0
      %p77 = por %p75, %p76
      %p78 = scmp.ne.s32.totalorder %s70, %s72
      %p79 = scmp.eq.s32.totalorder %s20, 1
      %p80 = por %p78, %p79
      %p81 = scmp.ne.s32.totalorder %s72, %s73
      %p82 = scmp.eq.s32.totalorder %s20, 0
      %p83 = por %p81, %p82
      %p84 = scmp.ne.s32.totalorder %s72, %s73
      %p85 = scmp.eq.s32.totalorder %s21, 1
      %p86 = por %p84, %p85
      %p88 = scmp.ne.s32.totalorder %s73, %s87
      %p89 = scmp.eq.s32.totalorder %s21, 0
      %p90 = por %p88, %p89
      %s91 = ssub.s32 %s15, %s22
      %p92 = scmp.eq.s32.totalorder %s91, 0
      %s94 = sadd.s32 %s93, 1
      %s95 = scalar_select %p92, %s93, %s94
      %p98 = pneg %p92
      %p99 = scmp.eq.s32.totalorder %s15, 1
      %p100 = por %p98, %p99
      %p101 = scmp.ne.s32.totalorder %s93, %s96
      %p102 = scmp.eq.s32.totalorder %s15, 0
      %p103 = por %p101, %p102
      %p104 = scmp.ne.s32.totalorder %s93, %s96
      %p105 = scmp.eq.s32.totalorder %s20, 1
      %p106 = por %p104, %p105
      %p107 = scmp.ne.s32.totalorder %s96, %s97
      %p108 = scmp.eq.s32.totalorder %s20, 0
      %p109 = por %p107, %p108
      %p110 = scmp.ne.s32.totalorder %s96, %s97
      %p111 = scmp.eq.s32.totalorder %s21, 1
      %p112 = por %p110, %p111
      %p114 = scmp.ne.s32.totalorder %s97, %s113
      %p115 = scmp.eq.s32.totalorder %s21, 0
      %p116 = por %p114, %p115
      %s118 = sadd.s32 %s117, 1
      %p121 = scmp.eq.s32.totalorder %s15, 1
      %p122 = scmp.ne.s32.totalorder %s117, %s119
      %p123 = scmp.eq.s32.totalorder %s15, 0
      %p124 = por %p122, %p123
      %p125 = scmp.ne.s32.totalorder %s117, %s119
      %p126 = scmp.eq.s32.totalorder %s20, 1
      %p127 = por %p125, %p126
      %p128 = scmp.ne.s32.totalorder %s119, %s120
      %p129 = scmp.eq.s32.totalorder %s20, 0
      %p130 = por %p128, %p129
      %p131 = scmp.ne.s32.totalorder %s119, %s120
      %p132 = scmp.eq.s32.totalorder %s21, 1
      %p133 = por %p131, %p132
      %p135 = scmp.ne.s32.totalorder %s120, %s134
      %p136 = scmp.eq.s32.totalorder %s21, 0
      %p137 = por %p135, %p136
      %s138 = ssub.s32 %s15, %s22
      %p139 = scmp.eq.s32.totalorder %s138, 0
      %s141 = sadd.s32 %s140, 1
      %s142 = scalar_select %p139, %s140, %s141
      %p145 = pneg %p139
      %p146 = scmp.eq.s32.totalorder %s15, 1
      %p147 = por %p145, %p146
      %p148 = scmp.ne.s32.totalorder %s140, %s143
      %p149 = scmp.eq.s32.totalorder %s15, 0
      %p150 = por %p148, %p149
      %p151 = scmp.ne.s32.totalorder %s140, %s143
      %p152 = scmp.eq.s32.totalorder %s20, 1
      %p153 = por %p151, %p152
      %p154 = scmp.ne.s32.totalorder %s143, %s144
      %p155 = scmp.eq.s32.totalorder %s20, 0
      %p156 = por %p154, %p155
      %p157 = scmp.ne.s32.totalorder %s143, %s144
      %p158 = scmp.eq.s32.totalorder %s21, 1
      %p159 = por %p157, %p158
      %p161 = scmp.ne.s32.totalorder %s144, %s160
      %p162 = scmp.eq.s32.totalorder %s21, 0
      %p163 = por %p161, %p162
      %s164 = ssub.s32 %s15, %s22
      %p165 = scmp.eq.s32.totalorder %s164, 0
      %s167 = sadd.s32 %s166, 1
      %s168 = scalar_select %p165, %s166, %s167
      %p171 = pneg %p165
      %p172 = scmp.eq.s32.totalorder %s15, 1
      %p173 = por %p171, %p172
      %p174 = scmp.ne.s32.totalorder %s166, %s169
      %p175 = scmp.eq.s32.totalorder %s15, 0
      %p176 = por %p174, %p175
      %p177 = scmp.ne.s32.totalorder %s166, %s169
      %p178 = scmp.eq.s32.totalorder %s20, 1
      %p179 = por %p177, %p178
      %p180 = scmp.ne.s32.totalorder %s169, %s170
      %p181 = scmp.eq.s32.totalorder %s20, 0
      %p182 = por %p180, %p181
      %p183 = scmp.ne.s32.totalorder %s169, %s170
      %p184 = scmp.eq.s32.totalorder %s21, 1
      %p185 = por %p183, %p184
      %p187 = scmp.ne.s32.totalorder %s170, %s186
      %p188 = scmp.eq.s32.totalorder %s21, 0
      %p189 = por %p187, %p188
      %p190 = scmp.le.s32.totalorder 1, %s15
      %p191 = scmp.lt.s32.totalorder %s15, 3
      %p192 = pnand %p190, %p191
      %p193 = pneg %p192
      // Predicated region
      $region9: #{pythiaseek_attention_forward.1} parent=5 // pred_check
        _
      $region10: #{pythiaseek_attention_forward.1} parent=5 // pred_check_branch
        %195 = sbr.rel (%p192) target = $region12
      $region11: #{pythiaseek_attention_forward.1} parent=5 // pred_region
        %s196 = ssub.s32 %s15, 1
        // Predicated region
        $region13: #{pythiaseek_attention_forward.1} parent=11 // pred_check
          %p197 = pneg %p62
        $region14: #{pythiaseek_attention_forward.1} parent=11 // pred_check_branch
          %199 = sbr.rel (%p197) target = $region16
        $region15: #{pythiaseek_attention_forward.1} parent=11 // pred_region
          _
        $region16: #{pythiaseek_attention_forward.1} parent=11 // pred_fallthru
          _
        // Predicated region
        $region17: #{pythiaseek_attention_forward.1} parent=11 // pred_check
          %p200 = pneg %p83
        $region18: #{pythiaseek_attention_forward.1} parent=11 // pred_check_branch
          %202 = sbr.rel (%p200) target = $region20
        $region19: #{pythiaseek_attention_forward.1} parent=11 // pred_region
          _
        $region20: #{pythiaseek_attention_forward.1} parent=11 // pred_fallthru
          _
        // Predicated region
        $region21: #{pythiaseek_attention_forward.1} parent=11 // pred_check
          %p203 = pneg %p130
        $region22: #{pythiaseek_attention_forward.1} parent=11 // pred_check_branch
          %205 = sbr.rel (%p203) target = $region24
        $region23: #{pythiaseek_attention_forward.1} parent=11 // pred_region
          _
        $region24: #{pythiaseek_attention_forward.1} parent=11 // pred_fallthru
          _
      $region12: #{pythiaseek_attention_forward.1} parent=5 // pred_fallthru
        _
      %p206 = scmp.lt.s32.totalorder %s15, 2
      // Predicated region
      $region25: #{pythiaseek_attention_forward.1} parent=5 // pred_check
        %p207 = pneg %p206
      $region26: #{pythiaseek_attention_forward.1} parent=5 // pred_check_branch
        %209 = sbr.rel (%p207) target = $region28
      $region27: #{pythiaseek_attention_forward.1} parent=5 // pred_region
        // Predicated region
        $region29: #{pythiaseek_attention_forward.1} parent=27 // pred_check
          %p210 = pneg %p35
        $region30: #{pythiaseek_attention_forward.1} parent=27 // pred_check_branch
          %212 = sbr.rel (%p210) target = $region32
        $region31: #{pythiaseek_attention_forward.1} parent=27 // pred_region
          %p213 = scmp.lt.s32.totalorder %s15, 1
          %s214 = scalar_select %p213, %s15, 1
          %s215 = smul.addr %s214, 8
          %s216 = scalar_lea.vmem %s0, %s215
        $region32: #{pythiaseek_attention_forward.1} parent=27 // pred_fallthru
          _
        // Predicated region
        $region33: #{pythiaseek_attention_forward.1} parent=27 // pred_check
          %p217 = pneg %p103
        $region34: #{pythiaseek_attention_forward.1} parent=27 // pred_check_branch
          %219 = sbr.rel (%p217) target = $region36
        $region35: #{pythiaseek_attention_forward.1} parent=27 // pred_region
          %s220 = sand.u32 %s93, 1
          %s221 = sand.u32 %s93, 1
          %s222 = smul.addr %s221, 24
          %s223 = scalar_lea.vmem [#allocation2], %s222
          %s224 = smul.addr %s15, 8
          %s225 = scalar_lea.vmem %s3, %s224
          // Predicated region
          $region37: #{pythiaseek_attention_forward.1} parent=35 // pred_check
            _
          $region38: #{pythiaseek_attention_forward.1} parent=35 // pred_check_branch
            %227 = sbr.rel (0) target = $region40
          $region39: #{pythiaseek_attention_forward.1} parent=35 // pred_region
            // Predicated region
            $region41: #{pythiaseek_attention_forward.1} parent=39 // pred_check
              _
            $region42: #{pythiaseek_attention_forward.1} parent=39 // pred_check_branch
              %229 = sbr.rel (0) target = $region44
            $region43: #{pythiaseek_attention_forward.1} parent=39 // pred_region
              // Predicated region
              $region56: #{pythiaseek_attention_forward.1} parent=43 // pred_check
                _
              $region57: #{pythiaseek_attention_forward.1} parent=43 // pred_check_branch
                %248 = sbr.rel (0) target = $region59
              $region58: #{pythiaseek_attention_forward.1} parent=43 // pred_region
                loop: start=0, step=1, limit=1
                $region60: #{pythiaseek_attention_forward.1} parent=58 // loop_pre_header
                  _
                $region61: #{pythiaseek_attention_forward.1} parent=58 // loop_header
                  %s250 = sphi 0, %s254
                  %p251 = scmp.ge.s32.totalorder %s250, 1
                  %s255 = sphi %s225, %s225
                  %s256 = sphi %s223, %s223
                $region62: #{pythiaseek_attention_forward.1} parent=58 // loop_header_branch
                  %253 = sbr.rel (%p251) target = $region66
                $region63: #{pythiaseek_attention_forward.1} parent=58 // loop_body
                  %v257 = vld [vmem:[%s255] sm:$0xff]
                  %258 = vst [vmem:[%s256] sm:$0xff] %v257
                  %v259 = vld [vmem:[%s255 + $0x10] sm:$0xff]
                  %260 = vst [vmem:[%s256 + $0x8] sm:$0xff] %v259
                  %v261 = vld [vmem:[%s255 + $0x20] sm:$0xff]
                  %262 = vst [vmem:[%s256 + $0x10] sm:$0xff] %v261
                $region64: #{pythiaseek_attention_forward.1} parent=58 // loop_footer
                  %s254 = sadd.s32 1, %s250
                $region65: #{pythiaseek_attention_forward.1} parent=58 // loop_footer_branch
                  %249 = sbr.rel target = $region61
                $region66: #{pythiaseek_attention_forward.1} parent=58 // loop_exit
                  _
              $region59: #{pythiaseek_attention_forward.1} parent=43 // pred_fallthru
                _
              // Predicated region
              $region67: #{pythiaseek_attention_forward.1} parent=43 // pred_check
                _
              $region68: #{pythiaseek_attention_forward.1} parent=43 // pred_check_branch
                %264 = sbr.rel target = $region70
              $region69: #{pythiaseek_attention_forward.1} parent=43 // pred_region
                _
              $region70: #{pythiaseek_attention_forward.1} parent=43 // pred_fallthru
                _
            $region44: #{pythiaseek_attention_forward.1} parent=39 // pred_fallthru
              _
            // Predicated region
            $region45: #{pythiaseek_attention_forward.1} parent=39 // pred_check
              _
            $region46: #{pythiaseek_attention_forward.1} parent=39 // pred_check_branch
              %231 = sbr.rel target = $region48
            $region47: #{pythiaseek_attention_forward.1} parent=39 // pred_region
              loop: start=0, step=1, limit=1
              $region49: #{pythiaseek_attention_forward.1} parent=47 // loop_pre_header
                _
              $region50: #{pythiaseek_attention_forward.1} parent=47 // loop_header
                %s234 = sphi 0, %s238
                %p235 = scmp.ge.s32.totalorder %s234, 1
                %s239 = sphi %s225, %s225
                %s240 = sphi %s223, %s223
              $region51: #{pythiaseek_attention_forward.1} parent=47 // loop_header_branch
                %237 = sbr.rel (%p235) target = $region55
              $region52: #{pythiaseek_attention_forward.1} parent=47 // loop_body
                %v241 = vld [vmem:[%s239] sm:$0xff]
                %242 = vst [vmem:[%s240] sm:$0xff] %v241
                %v243 = vld [vmem:[%s239 + $0x10] sm:$0xff]
                %244 = vst [vmem:[%s240 + $0x8] sm:$0xff] %v243
                %v245 = vld [vmem:[%s239 + $0x20] sm:$0xff]
                %246 = vst [vmem:[%s240 + $0x10] sm:$0xff] %v245
              $region53: #{pythiaseek_attention_forward.1} parent=47 // loop_footer
                %s238 = sadd.s32 1, %s234
              $region54: #{pythiaseek_attention_forward.1} parent=47 // loop_footer_branch
                %233 = sbr.rel target = $region50
              $region55: #{pythiaseek_attention_forward.1} parent=47 // loop_exit
                _
            $region48: #{pythiaseek_attention_forward.1} parent=39 // pred_fallthru
              _
          $region40: #{pythiaseek_attention_forward.1} parent=35 // pred_fallthru
            _
          %265 = vnop
        $region36: #{pythiaseek_attention_forward.1} parent=27 // pred_fallthru
          _
        // Predicated region
        $region71: #{pythiaseek_attention_forward.1} parent=27 // pred_check
          %p266 = pneg %p150
        $region72: #{pythiaseek_attention_forward.1} parent=27 // pred_check_branch
          %268 = sbr.rel (%p266) target = $region74
        $region73: #{pythiaseek_attention_forward.1} parent=27 // pred_region
          %p269 = scmp.lt.s32.totalorder %s15, 1
          %s270 = scalar_select %p269, %s15, 1
          %s271 = smul.addr %s270, 8
          %s272 = scalar_lea.vmem %s5, %s271
        $region74: #{pythiaseek_attention_forward.1} parent=27 // pred_fallthru
          _
      $region28: #{pythiaseek_attention_forward.1} parent=5 // pred_fallthru
        _
      %p273 = scmp.le.s32.totalorder 1, %s15
      %p274 = scmp.lt.s32.totalorder %s15, 3
      %p275 = pnand %p273, %p274
      %p276 = pneg %p275
      // Predicated region
      $region75: #{pythiaseek_attention_forward.1} parent=5 // pred_check
        _
      $region76: #{pythiaseek_attention_forward.1} parent=5 // pred_check_branch
        %278 = sbr.rel (%p275) target = $region78
      $region77: #{pythiaseek_attention_forward.1} parent=5 // pred_region
        %s279 = ssub.s32 %s15, 1
        %s280 = sand.u32 %s96, 1
        %s281 = sand.u32 %s96, 1
        %s282 = smul.addr %s281, 24
        %s283 = scalar_lea.vmem [#allocation2], %s282
        // Predicated region
        $region79: #{pythiaseek_attention_forward.1} parent=77 // pred_check
          %p284 = pneg %p109
        $region80: #{pythiaseek_attention_forward.1} parent=77 // pred_check_branch
          %286 = sbr.rel (%p284) target = $region82
        $region81: #{pythiaseek_attention_forward.1} parent=77 // pred_region
          _
        $region82: #{pythiaseek_attention_forward.1} parent=77 // pred_fallthru
          _
        %p287 = scmp.lt.s32.totalorder %s20, 1
        %s288 = scalar_select %p287, %s20, 1
        %s289 = smul.addr %s288, 8
        %s290 = scalar_lea.vmem %s0, %s289
        %p291 = pneg %p41
        %p292 = pneg %p38
        %p293 = pneg %p62
        %p294 = pneg %p59
        %p295 = pneg %p83
        %p296 = pneg %p80
        %s297 = sand.u32 %s96, 1
        %s298 = sand.u32 %s96, 1
        %s299 = smul.addr %s298, 24
        %s300 = scalar_lea.vmem [#allocation2], %s299
        %p301 = pneg %p109
        %p302 = pneg %p106
        %p303 = pneg %p130
        %p304 = pneg %p127
        %p305 = scmp.lt.s32.totalorder %s20, 1
        %s306 = scalar_select %p305, %s20, 1
        %s307 = smul.addr %s306, 8
        %s308 = scalar_lea.vmem %s5, %s307
        %p309 = pneg %p156
        %p310 = pneg %p153
        %p311 = pneg %p182
        %p312 = pneg %p179
        %s313 = sand.u32 %s169, 1
        %s314 = scalar_lea.sflag [#allocation4], %s313
        %s315 = sand.u32 %s169, 1
        %s316 = smul.addr %s315, 8
        %s317 = scalar_lea.vmem [#allocation3], %s316
        %p318 = scmp.lt.s32.totalorder %s20, 1
        %s319 = scalar_select %p318, %s20, 1
        %s320 = smul.addr %s319, 8
        %s321 = scalar_lea.vmem %s0, %s320
        %p322 = scmp.lt.s32.totalorder %s20, 1
        %s323 = scalar_select %p322, %s20, 1
        %s324 = smul.addr %s323, 8
        %s325 = scalar_lea.vmem %s5, %s324
        %v327 = vld [vmem:[%s321] sm:$0xff]
        %v328 = vpack.c.bf16 %v327, %v327
        %v329 = vld [vmem:[%s1] sm:$0xf]
        %v330 = vld [vmem:[%s1 + $0x4] sm:$0xf]
        %v331 = vld [vmem:[%s1 + $0x8] sm:$0xf]
        %v332 = vld [vmem:[%s1 + $0xc] sm:$0xf]
        %v333 = vld [vmem:[%s1 + $0x10] sm:$0xf]
        %v334 = vld [vmem:[%s1 + $0x14] sm:$0xf]
        %v335 = vld [vmem:[%s1 + $0x18] sm:$0xf]
        %v336 = vld [vmem:[%s1 + $0x1c] sm:$0xf]
        %v337 = vld [vmem:[%s1 + $0x20] sm:$0xf]
        %v338 = vld [vmem:[%s1 + $0x24] sm:$0xf]
        %v339 = vld [vmem:[%s1 + $0x28] sm:$0xf]
        %v340 = vld [vmem:[%s1 + $0x2c] sm:$0xf]
        %v341 = vld [vmem:[%s1 + $0x30] sm:$0xf]
        %v342 = vld [vmem:[%s1 + $0x34] sm:$0xf]
        %v343 = vld [vmem:[%s1 + $0x38] sm:$0xf]
        %v344 = vld [vmem:[%s1 + $0x3c] sm:$0xf]
        %v345 = vld [vmem:[%s1 + $0x40] sm:$0xf]
        %v346 = vld [vmem:[%s1 + $0x44] sm:$0xf]
        %v347 = vld [vmem:[%s1 + $0x48] sm:$0xf]
        %v348 = vld [vmem:[%s1 + $0x4c] sm:$0xf]
        %v349 = vld [vmem:[%s1 + $0x50] sm:$0xf]
        %v350 = vld [vmem:[%s1 + $0x54] sm:$0xf]
        %v351 = vld [vmem:[%s1 + $0x58] sm:$0xf]
        %v352 = vld [vmem:[%s1 + $0x5c] sm:$0xf]
        %v353 = vld [vmem:[%s4] ss:$2 sm:$0x3]
        %v355 = vlaneseq
        %v356 = vshrl.u32 %v355, 7
        %v357 = vsub.s32 0, %v356
        %v358 = vrot.slane %v353, %v357
        %v359 = vlaneseq
        %v360 = vshrl.u32 %v359, 7
        %v361 = vsub.s32 1, %v360
        %v362 = vrot.slane %v353, %v361
        %v389 = vunpack.c.l.b16 %v329
        %v390 = vunpack.c.l.b16 %v330
        %v391 = vunpack.c.l.b16 %v331
        %v392 = vunpack.c.l.b16 %v332
        %v393 = vunpack.c.l.b16 %v333
        %v394 = vunpack.c.l.b16 %v334
        %v395 = vunpack.c.l.b16 %v335
        %v396 = vunpack.c.l.b16 %v336
        %v397 = vunpack.c.l.b16 %v337
        %v398 = vunpack.c.l.b16 %v338
        %v399 = vunpack.c.l.b16 %v339
        %v400 = vunpack.c.l.b16 %v340
        %v401 = vunpack.c.l.b16 %v341
        %v402 = vunpack.c.l.b16 %v342
        %v403 = vunpack.c.l.b16 %v343
        %v404 = vunpack.c.l.b16 %v344
        %v405 = vunpack.c.l.b16 %v345
        %v406 = vunpack.c.l.b16 %v346
        %v407 = vunpack.c.l.b16 %v347
        %v408 = vunpack.c.l.b16 %v348
        %v409 = vunpack.c.l.b16 %v349
        %v410 = vunpack.c.l.b16 %v350
        %v411 = vunpack.c.l.b16 %v351
        %v412 = vunpack.c.l.b16 %v352
        %v413 = vpack.c.b16 %v390, %v389
        %v414 = vpack.c.b16 %v392, %v391
        %v415 = vpack.c.b16 %v394, %v393
        %v416 = vpack.c.b16 %v396, %v395
        %v417 = vpack.c.b16 %v398, %v397
        %v418 = vpack.c.b16 %v400, %v399
        %v419 = vpack.c.b16 %v402, %v401
        %v420 = vpack.c.b16 %v404, %v403
        %v421 = vpack.c.b16 %v406, %v405
        %v422 = vpack.c.b16 %v408, %v407
        %v423 = vpack.c.b16 %v410, %v409
        %v424 = vpack.c.b16 %v412, %v411
        %vm425 = vcmask 523264
        %v427 = vsel %vm425, %v328, 0
        %v430 = vsel %vm425, %v413, 0
        %v433 = vsel %vm425, %v414, 0
        %v436 = vsel %vm425, %v415, 0
        %v439 = vsel %vm425, %v416, 0
        %v442 = vsel %vm425, %v417, 0
        %v445 = vsel %vm425, %v418, 0
        %v448 = vsel %vm425, %v419, 0
        %v451 = vsel %vm425, %v420, 0
        %v454 = vsel %vm425, %v421, 0
        %v457 = vsel %vm425, %v422, 0
        %v460 = vsel %vm425, %v423, 0
        %v463 = vsel %vm425, %v424, 0
        %465 = vmatprep.subr.bf16.mxu0 0
        %466 = vmatpush1.bf16.xpose.msra.mxu0 %v430
        %467 = vmatprep.subr.bf16.mxu0 0
        %468 = vmatpush1.bf16.xpose.msra.mxu0 %v433
        %469 = vmatprep.subr.bf16.mxu0 0
        %470 = vmatpush1.bf16.xpose.msra.mxu0 %v436
        %471 = vmatprep.subr.bf16.mxu0 0
        %472 = vmatpush1.bf16.xpose.msra.mxu0 %v439
        %473 = vmatprep.subr.bf16.mxu0 0
        %474 = vmatpush1.bf16.xpose.msra.mxu0 %v442
        %475 = vmatprep.subr.bf16.mxu0 0
        %476 = vmatpush1.bf16.xpose.msra.mxu0 %v445
        %477 = vmatprep.subr.bf16.mxu0 0
        %478 = vmatpush1.bf16.xpose.msra.mxu0 %v448
        %479 = vmatprep.subr.bf16.mxu0 0
        %480 = vmatpush1.bf16.xpose.msra.mxu0 %v451
        %481 = vmatprep.subr.bf16.mxu0 0
        %482 = vmatpush1.bf16.xpose.msra.mxu0 %v454
        %483 = vmatprep.subr.bf16.mxu0 0
        %484 = vmatpush1.bf16.xpose.msra.mxu0 %v457
        %485 = vmatprep.subr.bf16.mxu0 0
        %486 = vmatpush1.bf16.xpose.msra.mxu0 %v460
        %487 = vmatprep.subr.bf16.mxu0 0
        %488 = vmatpush1.bf16.xpose.msra.mxu0 %v463
        %489 = vmatprep.subr.bf16.mxu0 0
        %490 = vmatpush1.bf16.xpose.msra.mxu0 0
        %491 = vmatprep.subr.bf16.mxu0 0
        %492 = vmatpush1.bf16.xpose.msra.mxu0 0
        %493 = vmatprep.subr.bf16.mxu0 0
        %494 = vmatpush1.bf16.xpose.msra.mxu0 0
        %495 = vmatprep.subr.bf16.mxu0 0
        %496 = vmatpush1.bf16.xpose.msra.mxu0 0
        %497 = vmatprep.mubr.bf16.mxu0 0
        %498 = vmatmul.mubr.bf16.gmra.mrb[0].mxu0 %v427
        %v499 = vpop.f32.mrb[0].mxu0
        %v500 = vadd.f32 %v358, %v499
        %v501 = vpop.f32.mrb[0].mxu0
        %v502 = vadd.f32 %v362, %v501
        %v503 = vpop.f32.mrb[0].mxu0
        %v504 = vpop.f32.mrb[0].mxu0
        %505 = vdwg.mxu0
        %v506 = vld [vmem:[%s283] sm:$0xff]
        %s507 = scalar_lea.vmem %s283, 8 [#allocation2]
        %v508 = vld [vmem:[%s507] sm:$0xff]
        %s509 = scalar_lea.vmem %s283, 16 [#allocation2]
        %v510 = vld [vmem:[%s509] sm:$0xff]
        %511 = vrot.lane.b32.xlu0 %v500, 126
        %v512 = vpop.permute.xlu0 %511
        %513 = vrot.lane.b32.xlu0 %v500, 2
        %v514 = vpop.permute.xlu0 %513
        %v515 = vmul.f32 %v500, %v506
        %v516 = vmul.f32 %v512, %v508
        %v517 = vadd.f32 %v515, %v516
        %v518 = vmul.f32 %v514, %v510
        %v519 = vadd.f32 %v517, %v518
        %v520 = vlaneseq
        %v521 = vshrl.u32 %v520, 7
        %v522 = vlaneseq
        %v523 = vand.u32 %v522, 127
        %vm524 = vcmp.le.s32.totalorder %v523, %v521
        %v525 = vld [vmem:[%s325] sm:$0xff]
        %v526 = vpack.c.bf16 %v519, %v519
        %528 = vrot.lane.b32.xlu0 %v526, 64
        %v529 = vpop.permute.xlu0 %528
        %vm530 = vcmask 130048
        %v532 = vsel %vm530, %v526, 0
        %v535 = vsel %vm530, %v529, 0
        %537 = vmatprep.subr.bf16.mxu0 0
        %538 = vmatpush1.bf16.xpose.msra.mxu0 %v535
        %539 = vmatprep.subr.bf16.mxu0 0
        %540 = vmatpush1.bf16.xpose.msra.mxu0 0
        %541 = vmatprep.subr.bf16.mxu0 0
        %542 = vmatpush1.bf16.xpose.msra.mxu0 0
        %543 = vmatprep.subr.bf16.mxu0 0
        %544 = vmatpush1.bf16.xpose.msra.mxu0 0
        %545 = vmatprep.subr.bf16.mxu0 0
        %546 = vmatpush1.bf16.xpose.msra.mxu0 0
        %547 = vmatprep.subr.bf16.mxu0 0
        %548 = vmatpush1.bf16.xpose.msra.mxu0 0
        %549 = vmatprep.subr.bf16.mxu0 0
        %550 = vmatpush1.bf16.xpose.msra.mxu0 0
        %551 = vmatprep.subr.bf16.mxu0 0
        %552 = vmatpush1.bf16.xpose.msra.mxu0 0
        %553 = vmatprep.subr.bf16.mxu0 0
        %554 = vmatpush1.bf16.xpose.msra.mxu0 0
        %555 = vmatprep.subr.bf16.mxu0 0
        %556 = vmatpush1.bf16.xpose.msra.mxu0 0
        %557 = vmatprep.subr.bf16.mxu0 0
        %558 = vmatpush1.bf16.xpose.msra.mxu0 0
        %559 = vmatprep.subr.bf16.mxu0 0
        %560 = vmatpush1.bf16.xpose.msra.mxu0 0
        %561 = vmatprep.subr.bf16.mxu0 0
        %562 = vmatpush1.bf16.xpose.msra.mxu0 0
        %563 = vmatprep.subr.bf16.mxu0 0
        %564 = vmatpush1.bf16.xpose.msra.mxu0 0
        %565 = vmatprep.subr.bf16.mxu0 0
        %566 = vmatpush1.bf16.xpose.msra.mxu0 0
        %567 = vmatprep.subr.bf16.mxu0 0
        %568 = vmatpush1.bf16.xpose.msra.mxu0 0
        %569 = vmatprep.mubr.bf16.mxu0 0
        %570 = vmatmul.mubr.bf16.gmra.mrb[0].mxu0 %v532
        %v571 = vpop.f32.mrb[0].mxu0
        %v572 = vadd.f32 0.0, %v571
        %v573 = vpop.f32.mrb[0].mxu0
        %v574 = vpop.f32.mrb[0].mxu0
        %v575 = vpop.f32.mrb[0].mxu0
        %576 = vdwg.mxu0
        %v577 = vmul.f32 %v572, 0.25
        %v578 = vsel %vm524, %v577, -3.4028235e+38
        %v579 = vadd.f32 %v578, %v525
        %v580 = vmax.f32 %v579, -3.4028235e+38
        %vm581 = vcmask 64512
        %v582 = vsel %vm581, %v580, -inf
        %583 = vmax.xlane.f32.xlu0 %v582
        %v584 = vpop.xlane.xlu0 %583
        %v585 = vsub.f32 %v580, %v584
        %v586 = vmul.f32 %v585, 1.442695
        %v587 = vpow.pop %v586
        %v588 = vsel %vm581, %v587, 0.0
        %589 = vadd.xlane.f32.xlu0 %v588
        %v590 = vpop.xlane.xlu0 %589
        %v591 = vrcp.pop %v590
        %v592 = vmul.f32 %v587, %v591
        %v593 = vpack.c.bf16 %v592, %v592
        %v594 = vpack.c.bf16 %v502, %v502
        %v596 = vsel %vm581, %v593, 0
        %vm598 = vcmask 1043456
        %v600 = vsel %vm598, %v594, 0
        %602 = vmatprep.subr.bf16.mxu0 0
        %603 = vmatpush1.bf16.msra.mxu0 %v600
        %604 = vmatprep.subr.bf16.mxu0 0
        %605 = vmatpush1.bf16.msra.mxu0 0
        %606 = vmatprep.subr.bf16.mxu0 0
        %607 = vmatpush1.bf16.msra.mxu0 0
        %608 = vmatprep.subr.bf16.mxu0 0
        %609 = vmatpush1.bf16.msra.mxu0 0
        %610 = vmatprep.subr.bf16.mxu0 0
        %611 = vmatpush1.bf16.msra.mxu0 0
        %612 = vmatprep.subr.bf16.mxu0 0
        %613 = vmatpush1.bf16.msra.mxu0 0
        %614 = vmatprep.subr.bf16.mxu0 0
        %615 = vmatpush1.bf16.msra.mxu0 0
        %616 = vmatprep.subr.bf16.mxu0 0
        %617 = vmatpush1.bf16.msra.mxu0 0
        %618 = vmatprep.subr.bf16.mxu0 0
        %619 = vmatpush1.bf16.msra.mxu0 0
        %620 = vmatprep.subr.bf16.mxu0 0
        %621 = vmatpush1.bf16.msra.mxu0 0
        %622 = vmatprep.subr.bf16.mxu0 0
        %623 = vmatpush1.bf16.msra.mxu0 0
        %624 = vmatprep.subr.bf16.mxu0 0
        %625 = vmatpush1.bf16.msra.mxu0 0
        %626 = vmatprep.subr.bf16.mxu0 0
        %627 = vmatpush1.bf16.msra.mxu0 0
        %628 = vmatprep.subr.bf16.mxu0 0
        %629 = vmatpush1.bf16.msra.mxu0 0
        %630 = vmatprep.subr.bf16.mxu0 0
        %631 = vmatpush1.bf16.msra.mxu0 0
        %632 = vmatprep.subr.bf16.mxu0 0
        %633 = vmatpush1.bf16.msra.mxu0 0
        %634 = vmatprep.mubr.bf16.mxu0 0
        %635 = vmatmul.mubr.bf16.gmra.mrb[0].mxu0 %v596
        %v636 = vpop.f32.mrb[0].mxu0
        %v637 = vadd.f32 0.0, %v636
        %v638 = vpop.f32.mrb[0].mxu0
        %v639 = vpop.f32.mrb[0].mxu0
        %v640 = vpop.f32.mrb[0].mxu0
        %641 = vdwg.mxu0
        %v642 = vpack.c.bf16 %v637, %v637
        %v643 = vld [vmem:[%s2] sm:$0xf]
        %v644 = vld [vmem:[%s2 + $0x4] sm:$0xf]
        %645 = vrot.lane.b32.xlu0 %v526, 112
        %v646 = vpop.permute.xlu0 %645
        %647 = vrot.lane.b32.xlu0 %v526, 48
        %v648 = vpop.permute.xlu0 %647
        %v650 = vsel %vm530, %v646, 0
        %v653 = vsel %vm530, %v648, 0
        %655 = vmatprep.subr.bf16.mxu0 0
        %656 = vmatpush1.bf16.xpose.msra.mxu0 %v653
        %657 = vmatprep.subr.bf16.mxu0 0
        %658 = vmatpush1.bf16.xpose.msra.mxu0 0
        %659 = vmatprep.subr.bf16.mxu0 0
        %660 = vmatpush1.bf16.xpose.msra.mxu0 0
        %661 = vmatprep.subr.bf16.mxu0 0
        %662 = vmatpush1.bf16.xpose.msra.mxu0 0
        %663 = vmatprep.subr.bf16.mxu0 0
        %664 = vmatpush1.bf16.xpose.msra.mxu0 0
        %665 = vmatprep.subr.bf16.mxu0 0
        %666 = vmatpush1.bf16.xpose.msra.mxu0 0
        %667 = vmatprep.subr.bf16.mxu0 0
        %668 = vmatpush1.bf16.xpose.msra.mxu0 0
        %669 = vmatprep.subr.bf16.mxu0 0
        %670 = vmatpush1.bf16.xpose.msra.mxu0 0
        %671 = vmatprep.subr.bf16.mxu0 0
        %672 = vmatpush1.bf16.xpose.msra.mxu0 0
        %673 = vmatprep.subr.bf16.mxu0 0
        %674 = vmatpush1.bf16.xpose.msra.mxu0 0
        %675 = vmatprep.subr.bf16.mxu0 0
        %676 = vmatpush1.bf16.xpose.msra.mxu0 0
        %677 = vmatprep.subr.bf16.mxu0 0
        %678 = vmatpush1.bf16.xpose.msra.mxu0 0
        %679 = vmatprep.subr.bf16.mxu0 0
        %680 = vmatpush1.bf16.xpose.msra.mxu0 0
        %681 = vmatprep.subr.bf16.mxu0 0
        %682 = vmatpush1.bf16.xpose.msra.mxu0 0
        %683 = vmatprep.subr.bf16.mxu0 0
        %684 = vmatpush1.bf16.xpose.msra.mxu0 0
        %685 = vmatprep.subr.bf16.mxu0 0
        %686 = vmatpush1.bf16.xpose.msra.mxu0 0
        %687 = vmatprep.mubr.bf16.mxu0 0
        %688 = vmatmul.mubr.bf16.gmra.mrb[0].mxu0 %v650
        %v689 = vpop.f32.mrb[0].mxu0
        %v690 = vadd.f32 0.0, %v689
        %v691 = vpop.f32.mrb[0].mxu0
        %v692 = vpop.f32.mrb[0].mxu0
        %v693 = vpop.f32.mrb[0].mxu0
        %694 = vdwg.mxu0
        %v695 = vmul.f32 %v690, 0.25
        %v696 = vsel %vm524, %v695, -3.4028235e+38
        %v697 = vadd.f32 %v696, %v525
        %v698 = vmax.f32 %v697, -3.4028235e+38
        %v699 = vsel %vm581, %v698, -inf
        %700 = vmax.xlane.f32.xlu0 %v699
        %v701 = vpop.xlane.xlu0 %700
        %v702 = vsub.f32 %v698, %v701
        %v703 = vmul.f32 %v702, 1.442695
        %v704 = vpow.pop %v703
        %v705 = vsel %vm581, %v704, 0.0
        %706 = vadd.xlane.f32.xlu0 %v705
        %v707 = vpop.xlane.xlu0 %706
        %v708 = vrcp.pop %v707
        %v709 = vmul.f32 %v704, %v708
        %v710 = vpack.c.bf16 %v709, %v709
        %712 = vrot.lane.b32.xlu0 %v594, 112
        %v713 = vpop.permute.xlu0 %712
        %v715 = vsel %vm581, %v710, 0
        %v718 = vsel %vm598, %v713, 0
        %720 = vmatprep.subr.bf16.mxu0 0
        %721 = vmatpush1.bf16.msra.mxu0 %v718
        %722 = vmatprep.subr.bf16.mxu0 0
        %723 = vmatpush1.bf16.msra.mxu0 0
        %724 = vmatprep.subr.bf16.mxu0 0
        %725 = vmatpush1.bf16.msra.mxu0 0
        %726 = vmatprep.subr.bf16.mxu0 0
        %727 = vmatpush1.bf16.msra.mxu0 0
        %728 = vmatprep.subr.bf16.mxu0 0
        %729 = vmatpush1.bf16.msra.mxu0 0
        %730 = vmatprep.subr.bf16.mxu0 0
        %731 = vmatpush1.bf16.msra.mxu0 0
        %732 = vmatprep.subr.bf16.mxu0 0
        %733 = vmatpush1.bf16.msra.mxu0 0
        %734 = vmatprep.subr.bf16.mxu0 0
        %735 = vmatpush1.bf16.msra.mxu0 0
        %736 = vmatprep.subr.bf16.mxu0 0
        %737 = vmatpush1.bf16.msra.mxu0 0
        %738 = vmatprep.subr.bf16.mxu0 0
        %739 = vmatpush1.bf16.msra.mxu0 0
        %740 = vmatprep.subr.bf16.mxu0 0
        %741 = vmatpush1.bf16.msra.mxu0 0
        %742 = vmatprep.subr.bf16.mxu0 0
        %743 = vmatpush1.bf16.msra.mxu0 0
        %744 = vmatprep.subr.bf16.mxu0 0
        %745 = vmatpush1.bf16.msra.mxu0 0
        %746 = vmatprep.subr.bf16.mxu0 0
        %747 = vmatpush1.bf16.msra.mxu0 0
        %748 = vmatprep.subr.bf16.mxu0 0
        %749 = vmatpush1.bf16.msra.mxu0 0
        %750 = vmatprep.subr.bf16.mxu0 0
        %751 = vmatpush1.bf16.msra.mxu0 0
        %752 = vmatprep.mubr.bf16.mxu0 0
        %753 = vmatmul.mubr.bf16.gmra.mrb[0].mxu0 %v715
        %v754 = vpop.f32.mrb[0].mxu0
        %v755 = vadd.f32 0.0, %v754
        %v756 = vpop.f32.mrb[0].mxu0
        %v757 = vpop.f32.mrb[0].mxu0
        %v758 = vpop.f32.mrb[0].mxu0
        %759 = vdwg.mxu0
        %v760 = vpack.c.bf16 %v755, %v755
        %s761 = scalar_lea.vmem %s2, 8
        %v762 = vld [vmem:[%s761] sm:$0xf]
        %v763 = vld [vmem:[%s761 + $0x4] sm:$0xf]
        %v766 = vunpack.c.l.b16 %v762
        %v767 = vunpack.c.l.b16 %v763
        %v768 = vpack.c.b16 %v767, %v766
        %v771 = vsel %vm530, %v760, 0
        %773 = vmatprep.subr.bf16.mxu0 0
        %774 = vmatpush1.bf16.msra.mxu0 %v768
        %775 = vmatprep.subr.bf16.mxu0 0
        %776 = vmatpush1.bf16.msra.mxu0 0
        %777 = vmatprep.subr.bf16.mxu0 0
        %778 = vmatpush1.bf16.msra.mxu0 0
        %779 = vmatprep.subr.bf16.mxu0 0
        %780 = vmatpush1.bf16.msra.mxu0 0
        %781 = vmatprep.subr.bf16.mxu0 0
        %782 = vmatpush1.bf16.msra.mxu0 0
        %783 = vmatprep.subr.bf16.mxu0 0
        %784 = vmatpush1.bf16.msra.mxu0 0
        %785 = vmatprep.subr.bf16.mxu0 0
        %786 = vmatpush1.bf16.msra.mxu0 0
        %787 = vmatprep.subr.bf16.mxu0 0
        %788 = vmatpush1.bf16.msra.mxu0 0
        %789 = vmatprep.subr.bf16.mxu0 0
        %790 = vmatpush1.bf16.msra.mxu0 0
        %791 = vmatprep.subr.bf16.mxu0 0
        %792 = vmatpush1.bf16.msra.mxu0 0
        %793 = vmatprep.subr.bf16.mxu0 0
        %794 = vmatpush1.bf16.msra.mxu0 0
        %795 = vmatprep.subr.bf16.mxu0 0
        %796 = vmatpush1.bf16.msra.mxu0 0
        %797 = vmatprep.subr.bf16.mxu0 0
        %798 = vmatpush1.bf16.msra.mxu0 0
        %799 = vmatprep.subr.bf16.mxu0 0
        %800 = vmatpush1.bf16.msra.mxu0 0
        %801 = vmatprep.subr.bf16.mxu0 0
        %802 = vmatpush1.bf16.msra.mxu0 0
        %803 = vmatprep.subr.bf16.mxu0 0
        %804 = vmatpush1.bf16.msra.mxu0 0
        %805 = vmatprep.mubr.bf16.mxu0 0
        %806 = vmatmul.mubr.bf16.gmra.mrb[0].mxu0 %v771
        %v807 = vpop.f32.mrb[0].mxu0
        %v808 = vadd.f32 0.0, %v807
        %v809 = vpop.f32.mrb[0].mxu0
        %v810 = vpop.f32.mrb[0].mxu0
        %v811 = vpop.f32.mrb[0].mxu0
        %812 = vdwg.mxu0
        %v815 = vunpack.c.l.b16 %v643
        %v816 = vunpack.c.l.b16 %v644
        %v817 = vpack.c.b16 %v816, %v815
        %v820 = vsel %vm530, %v642, 0
        %822 = vmatprep.subr.bf16.mxu0 0
        %823 = vmatpush1.bf16.msra.mxu0 %v817
        %824 = vmatprep.subr.bf16.mxu0 0
        %825 = vmatpush1.bf16.msra.mxu0 0
        %826 = vmatprep.subr.bf16.mxu0 0
        %827 = vmatpush1.bf16.msra.mxu0 0
        %828 = vmatprep.subr.bf16.mxu0 0
        %829 = vmatpush1.bf16.msra.mxu0 0
        %830 = vmatprep.subr.bf16.mxu0 0
        %831 = vmatpush1.bf16.msra.mxu0 0
        %832 = vmatprep.subr.bf16.mxu0 0
        %833 = vmatpush1.bf16.msra.mxu0 0
        %834 = vmatprep.subr.bf16.mxu0 0
        %835 = vmatpush1.bf16.msra.mxu0 0
        %836 = vmatprep.subr.bf16.mxu0 0
        %837 = vmatpush1.bf16.msra.mxu0 0
        %838 = vmatprep.subr.bf16.mxu0 0
        %839 = vmatpush1.bf16.msra.mxu0 0
        %840 = vmatprep.subr.bf16.mxu0 0
        %841 = vmatpush1.bf16.msra.mxu0 0
        %842 = vmatprep.subr.bf16.mxu0 0
        %843 = vmatpush1.bf16.msra.mxu0 0
        %844 = vmatprep.subr.bf16.mxu0 0
        %845 = vmatpush1.bf16.msra.mxu0 0
        %846 = vmatprep.subr.bf16.mxu0 0
        %847 = vmatpush1.bf16.msra.mxu0 0
        %848 = vmatprep.subr.bf16.mxu0 0
        %849 = vmatpush1.bf16.msra.mxu0 0
        %850 = vmatprep.subr.bf16.mxu0 0
        %851 = vmatpush1.bf16.msra.mxu0 0
        %852 = vmatprep.subr.bf16.mxu0 0
        %853 = vmatpush1.bf16.msra.mxu0 0
        %854 = vmatprep.mubr.bf16.mxu0 0
        %855 = vmatmul.mubr.bf16.gmra.mrb[0].mxu0 %v820
        %v856 = vpop.f32.mrb[0].mxu0
        %v857 = vadd.f32 %v808, %v856
        %v858 = vpop.f32.mrb[0].mxu0
        %v859 = vpop.f32.mrb[0].mxu0
        %v860 = vpop.f32.mrb[0].mxu0
        %861 = vdwg.mxu0
        %862 = vrot.lane.b32.xlu0 %v526, 96
        %v863 = vpop.permute.xlu0 %862
        %864 = vrot.lane.b32.xlu0 %v526, 32
        %v865 = vpop.permute.xlu0 %864
        %v867 = vsel %vm530, %v863, 0
        %v870 = vsel %vm530, %v865, 0
        %872 = vmatprep.subr.bf16.mxu0 0
        %873 = vmatpush1.bf16.xpose.msra.mxu0 %v870
        %874 = vmatprep.subr.bf16.mxu0 0
        %875 = vmatpush1.bf16.xpose.msra.mxu0 0
        %876 = vmatprep.subr.bf16.mxu0 0
        %877 = vmatpush1.bf16.xpose.msra.mxu0 0
        %878 = vmatprep.subr.bf16.mxu0 0
        %879 = vmatpush1.bf16.xpose.msra.mxu0 0
        %880 = vmatprep.subr.bf16.mxu0 0
        %881 = vmatpush1.bf16.xpose.msra.mxu0 0
        %882 = vmatprep.subr.bf16.mxu0 0
        %883 = vmatpush1.bf16.xpose.msra.mxu0 0
        %884 = vmatprep.subr.bf16.mxu0 0
        %885 = vmatpush1.bf16.xpose.msra.mxu0 0
        %886 = vmatprep.subr.bf16.mxu0 0
        %887 = vmatpush1.bf16.xpose.msra.mxu0 0
        %888 = vmatprep.subr.bf16.mxu0 0
        %889 = vmatpush1.bf16.xpose.msra.mxu0 0
        %890 = vmatprep.subr.bf16.mxu0 0
        %891 = vmatpush1.bf16.xpose.msra.mxu0 0
        %892 = vmatprep.subr.bf16.mxu0 0
        %893 = vmatpush1.bf16.xpose.msra.mxu0 0
        %894 = vmatprep.subr.bf16.mxu0 0
        %895 = vmatpush1.bf16.xpose.msra.mxu0 0
        %896 = vmatprep.subr.bf16.mxu0 0
        %897 = vmatpush1.bf16.xpose.msra.mxu0 0
        %898 = vmatprep.subr.bf16.mxu0 0
        %899 = vmatpush1.bf16.xpose.msra.mxu0 0
        %900 = vmatprep.subr.bf16.mxu0 0
        %901 = vmatpush1.bf16.xpose.msra.mxu0 0
        %902 = vmatprep.subr.bf16.mxu0 0
        %903 = vmatpush1.bf16.xpose.msra.mxu0 0
        %904 = vmatprep.mubr.bf16.mxu0 0
        %905 = vmatmul.mubr.bf16.gmra.mrb[0].mxu0 %v867
        %v906 = vpop.f32.mrb[0].mxu0
        %v907 = vadd.f32 0.0, %v906
        %v908 = vpop.f32.mrb[0].mxu0
        %v909 = vpop.f32.mrb[0].mxu0
        %v910 = vpop.f32.mrb[0].mxu0
        %911 = vdwg.mxu0
        %v912 = vmul.f32 %v907, 0.25
        %v913 = vsel %vm524, %v912, -3.4028235e+38
        %v914 = vadd.f32 %v913, %v525
        %v915 = vmax.f32 %v914, -3.4028235e+38
        %v916 = vsel %vm581, %v915, -inf
        %917 = vmax.xlane.f32.xlu0 %v916
        %v918 = vpop.xlane.xlu0 %917
        %v919 = vsub.f32 %v915, %v918
        %v920 = vmul.f32 %v919, 1.442695
        %v921 = vpow.pop %v920
        %v922 = vsel %vm581, %v921, 0.0
        %923 = vadd.xlane.f32.xlu0 %v922
        %v924 = vpop.xlane.xlu0 %923
        %v925 = vrcp.pop %v924
        %v926 = vmul.f32 %v921, %v925
        %v927 = vpack.c.bf16 %v926, %v926
        %928 = vrot.lane.b32.xlu0 %v594, 96
        %v929 = vpop.permute.xlu0 %928
        %v931 = vsel %vm581, %v927, 0
        %v934 = vsel %vm598, %v929, 0
        %936 = vmatprep.subr.bf16.mxu0 0
        %937 = vmatpush1.bf16.msra.mxu0 %v934
        %938 = vmatprep.subr.bf16.mxu0 0
        %939 = vmatpush1.bf16.msra.mxu0 0
        %940 = vmatprep.subr.bf16.mxu0 0
        %941 = vmatpush1.bf16.msra.mxu0 0
        %942 = vmatprep.subr.bf16.mxu0 0
        %943 = vmatpush1.bf16.msra.mxu0 0
        %944 = vmatprep.subr.bf16.mxu0 0
        %945 = vmatpush1.bf16.msra.mxu0 0
        %946 = vmatprep.subr.bf16.mxu0 0
        %947 = vmatpush1.bf16.msra.mxu0 0
        %948 = vmatprep.subr.bf16.mxu0 0
        %949 = vmatpush1.bf16.msra.mxu0 0
        %950 = vmatprep.subr.bf16.mxu0 0
        %951 = vmatpush1.bf16.msra.mxu0 0
        %952 = vmatprep.subr.bf16.mxu0 0
        %953 = vmatpush1.bf16.msra.mxu0 0
        %954 = vmatprep.subr.bf16.mxu0 0
        %955 = vmatpush1.bf16.msra.mxu0 0
        %956 = vmatprep.subr.bf16.mxu0 0
        %957 = vmatpush1.bf16.msra.mxu0 0
        %958 = vmatprep.subr.bf16.mxu0 0
        %959 = vmatpush1.bf16.msra.mxu0 0
        %960 = vmatprep.subr.bf16.mxu0 0
        %961 = vmatpush1.bf16.msra.mxu0 0
        %962 = vmatprep.subr.bf16.mxu0 0
        %963 = vmatpush1.bf16.msra.mxu0 0
        %964 = vmatprep.subr.bf16.mxu0 0
        %965 = vmatpush1.bf16.msra.mxu0 0
        %966 = vmatprep.subr.bf16.mxu0 0
        %967 = vmatpush1.bf16.msra.mxu0 0
        %968 = vmatprep.mubr.bf16.mxu0 0
        %969 = vmatmul.mubr.bf16.gmra.mrb[0].mxu0 %v931
        %v970 = vpop.f32.mrb[0].mxu0
        %v971 = vadd.f32 0.0, %v970
        %v972 = vpop.f32.mrb[0].mxu0
        %v973 = vpop.f32.mrb[0].mxu0
        %v974 = vpop.f32.mrb[0].mxu0
        %975 = vdwg.mxu0
        %v976 = vpack.c.bf16 %v971, %v971
        %s977 = scalar_lea.vmem %s2, 16
        %v978 = vld [vmem:[%s977] sm:$0xf]
        %v979 = vld [vmem:[%s977 + $0x4] sm:$0xf]
        %v982 = vunpack.c.l.b16 %v978
        %v983 = vunpack.c.l.b16 %v979
        %v984 = vpack.c.b16 %v983, %v982
        %v987 = vsel %vm530, %v976, 0
        %989 = vmatprep.subr.bf16.mxu0 0
        %990 = vmatpush1.bf16.msra.mxu0 %v984
        %991 = vmatprep.subr.bf16.mxu0 0
        %992 = vmatpush1.bf16.msra.mxu0 0
        %993 = vmatprep.subr.bf16.mxu0 0
        %994 = vmatpush1.bf16.msra.mxu0 0
        %995 = vmatprep.subr.bf16.mxu0 0
        %996 = vmatpush1.bf16.msra.mxu0 0
        %997 = vmatprep.subr.bf16.mxu0 0
        %998 = vmatpush1.bf16.msra.mxu0 0
        %999 = vmatprep.subr.bf16.mxu0 0
        %1000 = vmatpush1.bf16.msra.mxu0 0
        %1001 = vmatprep.subr.bf16.mxu0 0
        %1002 = vmatpush1.bf16.msra.mxu0 0
        %1003 = vmatprep.subr.bf16.mxu0 0
        %1004 = vmatpush1.bf16.msra.mxu0 0
        %1005 = vmatprep.subr.bf16.mxu0 0
        %1006 = vmatpush1.bf16.msra.mxu0 0
        %1007 = vmatprep.subr.bf16.mxu0 0
        %1008 = vmatpush1.bf16.msra.mxu0 0
        %1009 = vmatprep.subr.bf16.mxu0 0
        %1010 = vmatpush1.bf16.msra.mxu0 0
        %1011 = vmatprep.subr.bf16.mxu0 0
        %1012 = vmatpush1.bf16.msra.mxu0 0
        %1013 = vmatprep.subr.bf16.mxu0 0
        %1014 = vmatpush1.bf16.msra.mxu0 0
        %1015 = vmatprep.subr.bf16.mxu0 0
        %1016 = vmatpush1.bf16.msra.mxu0 0
        %1017 = vmatprep.subr.bf16.mxu0 0
        %1018 = vmatpush1.bf16.msra.mxu0 0
        %1019 = vmatprep.subr.bf16.mxu0 0
        %1020 = vmatpush1.bf16.msra.mxu0 0
        %1021 = vmatprep.mubr.bf16.mxu0 0
        %1022 = vmatmul.mubr.bf16.gmra.mrb[0].mxu0 %v987
        %v1023 = vpop.f32.mrb[0].mxu0
        %v1024 = vadd.f32 0.0, %v1023
        %v1025 = vpop.f32.mrb[0].mxu0
        %v1026 = vpop.f32.mrb[0].mxu0
        %v1027 = vpop.f32.mrb[0].mxu0
        %1028 = vdwg.mxu0
        %v1029 = vadd.f32 %v857, %v1024
        %1030 = vrot.lane.b32.xlu0 %v526, 80
        %v1031 = vpop.permute.xlu0 %1030
        %1032 = vrot.lane.b32.xlu0 %v526, 16
        %v1033 = vpop.permute.xlu0 %1032
        %v1035 = vsel %vm530, %v1031, 0
        %v1038 = vsel %vm530, %v1033, 0
        %1040 = vmatprep.subr.bf16.mxu0 0
        %1041 = vmatpush1.bf16.xpose.msra.mxu0 %v1038
        %1042 = vmatprep.subr.bf16.mxu0 0
        %1043 = vmatpush1.bf16.xpose.msra.mxu0 0
        %1044 = vmatprep.subr.bf16.mxu0 0
        %1045 = vmatpush1.bf16.xpose.msra.mxu0 0
        %1046 = vmatprep.subr.bf16.mxu0 0
        %1047 = vmatpush1.bf16.xpose.msra.mxu0 0
        %1048 = vmatprep.subr.bf16.mxu0 0
        %1049 = vmatpush1.bf16.xpose.msra.mxu0 0
        %1050 = vmatprep.subr.bf16.mxu0 0
        %1051 = vmatpush1.bf16.xpose.msra.mxu0 0
        %1052 = vmatprep.subr.bf16.mxu0 0
        %1053 = vmatpush1.bf16.xpose.msra.mxu0 0
        %1054 = vmatprep.subr.bf16.mxu0 0
        %1055 = vmatpush1.bf16.xpose.msra.mxu0 0
        %1056 = vmatprep.subr.bf16.mxu0 0
        %1057 = vmatpush1.bf16.xpose.msra.mxu0 0
        %1058 = vmatprep.subr.bf16.mxu0 0
        %1059 = vmatpush1.bf16.xpose.msra.mxu0 0
        %1060 = vmatprep.subr.bf16.mxu0 0
        %1061 = vmatpush1.bf16.xpose.msra.mxu0 0
        %1062 = vmatprep.subr.bf16.mxu0 0
        %1063 = vmatpush1.bf16.xpose.msra.mxu0 0
        %1064 = vmatprep.subr.bf16.mxu0 0
        %1065 = vmatpush1.bf16.xpose.msra.mxu0 0
        %1066 = vmatprep.subr.bf16.mxu0 0
        %1067 = vmatpush1.bf16.xpose.msra.mxu0 0
        %1068 = vmatprep.subr.bf16.mxu0 0
        %1069 = vmatpush1.bf16.xpose.msra.mxu0 0
        %1070 = vmatprep.subr.bf16.mxu0 0
        %1071 = vmatpush1.bf16.xpose.msra.mxu0 0
        %1072 = vmatprep.mubr.bf16.mxu0 0
        %1073 = vmatmul.mubr.bf16.gmra.mrb[0].mxu0 %v1035
        %v1074 = vpop.f32.mrb[0].mxu0
        %v1075 = vadd.f32 0.0, %v1074
        %v1076 = vpop.f32.mrb[0].mxu0
        %v1077 = vpop.f32.mrb[0].mxu0
        %v1078 = vpop.f32.mrb[0].mxu0
        %1079 = vdwg.mxu0
        %v1080 = vmul.f32 %v1075, 0.25
        %v1081 = vsel %vm524, %v1080, -3.4028235e+38
        %v1082 = vadd.f32 %v1081, %v525
        %v1083 = vmax.f32 %v1082, -3.4028235e+38
        %v1084 = vsel %vm581, %v1083, -inf
        %1085 = vmax.xlane.f32.xlu0 %v1084
        %v1086 = vpop.xlane.xlu0 %1085
        %v1087 = vsub.f32 %v1083, %v1086
        %v1088 = vmul.f32 %v1087, 1.442695
        %v1089 = vpow.pop %v1088
        %v1090 = vsel %vm581, %v1089, 0.0
        %1091 = vadd.xlane.f32.xlu0 %v1090
        %v1092 = vpop.xlane.xlu0 %1091
        %v1093 = vrcp.pop %v1092
        %v1094 = vmul.f32 %v1089, %v1093
        %v1095 = vpack.c.bf16 %v1094, %v1094
        %1096 = vrot.lane.b32.xlu0 %v594, 80
        %v1097 = vpop.permute.xlu0 %1096
        %v1099 = vsel %vm581, %v1095, 0
        %v1102 = vsel %vm598, %v1097, 0
        %1104 = vmatprep.subr.bf16.mxu0 0
        %1105 = vmatpush1.bf16.msra.mxu0 %v1102
        %1106 = vmatprep.subr.bf16.mxu0 0
        %1107 = vmatpush1.bf16.msra.mxu0 0
        %1108 = vmatprep.subr.bf16.mxu0 0
        %1109 = vmatpush1.bf16.msra.mxu0 0
        %1110 = vmatprep.subr.bf16.mxu0 0
        %1111 = vmatpush1.bf16.msra.mxu0 0
        %1112 = vmatprep.subr.bf16.mxu0 0
        %1113 = vmatpush1.bf16.msra.mxu0 0
        %1114 = vmatprep.subr.bf16.mxu0 0
        %1115 = vmatpush1.bf16.msra.mxu0 0
        %1116 = vmatprep.subr.bf16.mxu0 0
        %1117 = vmatpush1.bf16.msra.mxu0 0
        %1118 = vmatprep.subr.bf16.mxu0 0
        %1119 = vmatpush1.bf16.msra.mxu0 0
        %1120 = vmatprep.subr.bf16.mxu0 0
        %1121 = vmatpush1.bf16.msra.mxu0 0
        %1122 = vmatprep.subr.bf16.mxu0 0
        %1123 = vmatpush1.bf16.msra.mxu0 0
        %1124 = vmatprep.subr.bf16.mxu0 0
        %1125 = vmatpush1.bf16.msra.mxu0 0
        %1126 = vmatprep.subr.bf16.mxu0 0
        %1127 = vmatpush1.bf16.msra.mxu0 0
        %1128 = vmatprep.subr.bf16.mxu0 0
        %1129 = vmatpush1.bf16.msra.mxu0 0
        %1130 = vmatprep.subr.bf16.mxu0 0
        %1131 = vmatpush1.bf16.msra.mxu0 0
        %1132 = vmatprep.subr.bf16.mxu0 0
        %1133 = vmatpush1.bf16.msra.mxu0 0
        %1134 = vmatprep.subr.bf16.mxu0 0
        %1135 = vmatpush1.bf16.msra.mxu0 0
        %1136 = vmatprep.mubr.bf16.mxu0 0
        %1137 = vmatmul.mubr.bf16.gmra.mrb[0].mxu0 %v1099
        %v1138 = vpop.f32.mrb[0].mxu0
        %v1139 = vadd.f32 0.0, %v1138
        %v1140 = vpop.f32.mrb[0].mxu0
        %v1141 = vpop.f32.mrb[0].mxu0
        %v1142 = vpop.f32.mrb[0].mxu0
        %1143 = vdwg.mxu0
        %v1144 = vpack.c.bf16 %v1139, %v1139
        %s1145 = scalar_lea.vmem %s2, 24
        %v1146 = vld [vmem:[%s1145] sm:$0xf]
        %v1147 = vld [vmem:[%s1145 + $0x4] sm:$0xf]
        %v1150 = vunpack.c.l.b16 %v1146
        %v1151 = vunpack.c.l.b16 %v1147
        %v1152 = vpack.c.b16 %v1151, %v1150
        %v1155 = vsel %vm530, %v1144, 0
        %1157 = vmatprep.subr.bf16.mxu0 0
        %1158 = vmatpush1.bf16.msra.mxu0 %v1152
        %1159 = vmatprep.subr.bf16.mxu0 0
        %1160 = vmatpush1.bf16.msra.mxu0 0
        %1161 = vmatprep.subr.bf16.mxu0 0
        %1162 = vmatpush1.bf16.msra.mxu0 0
        %1163 = vmatprep.subr.bf16.mxu0 0
        %1164 = vmatpush1.bf16.msra.mxu0 0
        %1165 = vmatprep.subr.bf16.mxu0 0
        %1166 = vmatpush1.bf16.msra.mxu0 0
        %1167 = vmatprep.subr.bf16.mxu0 0
        %1168 = vmatpush1.bf16.msra.mxu0 0
        %1169 = vmatprep.subr.bf16.mxu0 0
        %1170 = vmatpush1.bf16.msra.mxu0 0
        %1171 = vmatprep.subr.bf16.mxu0 0
        %1172 = vmatpush1.bf16.msra.mxu0 0
        %1173 = vmatprep.subr.bf16.mxu0 0
        %1174 = vmatpush1.bf16.msra.mxu0 0
        %1175 = vmatprep.subr.bf16.mxu0 0
        %1176 = vmatpush1.bf16.msra.mxu0 0
        %1177 = vmatprep.subr.bf16.mxu0 0
        %1178 = vmatpush1.bf16.msra.mxu0 0
        %1179 = vmatprep.subr.bf16.mxu0 0
        %1180 = vmatpush1.bf16.msra.mxu0 0
        %1181 = vmatprep.subr.bf16.mxu0 0
        %1182 = vmatpush1.bf16.msra.mxu0 0
        %1183 = vmatprep.subr.bf16.mxu0 0
        %1184 = vmatpush1.bf16.msra.mxu0 0
        %1185 = vmatprep.subr.bf16.mxu0 0
        %1186 = vmatpush1.bf16.msra.mxu0 0
        %1187 = vmatprep.subr.bf16.mxu0 0
        %1188 = vmatpush1.bf16.msra.mxu0 0
        %1189 = vmatprep.mubr.bf16.mxu0 0
        %1190 = vmatmul.mubr.bf16.gmra.mrb[0].mxu0 %v1155
        %v1191 = vpop.f32.mrb[0].mxu0
        %v1192 = vadd.f32 0.0, %v1191
        %v1193 = vpop.f32.mrb[0].mxu0
        %v1194 = vpop.f32.mrb[0].mxu0
        %v1195 = vpop.f32.mrb[0].mxu0
        %1196 = vdwg.mxu0
        %v1197 = vadd.f32 %v1029, %v1192
        %v1198 = vld [vmem:[%s4 + $0x1] sm:$0x1]
        %v1199 = vlaneseq
        %v1200 = vshrl.u32 %v1199, 7
        %v1201 = vsub.s32 0, %v1200
        %v1202 = vrot.slane %v1198, %v1201
        %v1203 = vadd.f32 %v1197, %v1202
        %1204 = vst.msk [vmem:[%s317] sm:$0xff] %vm425, %v1203
        %s1205 = sand.u32 %s169, 1
        %s1206 = scalar_lea.sflag [#allocation4], %s1205
        %s1207 = sand.u32 %s169, 1
        %s1208 = smul.addr %s1207, 8
        %s1209 = scalar_lea.vmem [#allocation3], %s1208
        // Predicated region
        $region83: #{pythiaseek_attention_forward.1} parent=77 // pred_check
          %p1210 = pneg %p179
        $region84: #{pythiaseek_attention_forward.1} parent=77 // pred_check_branch
          %1212 = sbr.rel (%p1210) target = $region86
        $region85: #{pythiaseek_attention_forward.1} parent=77 // pred_region
          %s1214 = ssub.s32 128, 128
          %1215 = vsyncadd %s1206, %s1214
          %s1216 = smul.addr %s20, 128
          %s1217 = scalar_lea.hbm %s6, %s1216
          %s1219 = sshll.u32 %s1209, 4
          %s1220 = int_to_ptr.vmem [resolvable:$true] %s1219
          %1222 = dma.vmem_to_hbm [thread:$0]  %s1220, 128, %s1217, %s1206
        $region86: #{pythiaseek_attention_forward.1} parent=77 // pred_fallthru
          _
      $region78: #{pythiaseek_attention_forward.1} parent=5 // pred_fallthru
        _
      %p1223 = scmp.le.s32.totalorder 2, %s15
      // Predicated region
      $region87: #{pythiaseek_attention_forward.1} parent=5 // pred_check
        %p1224 = pneg %p1223
      $region88: #{pythiaseek_attention_forward.1} parent=5 // pred_check_branch
        %1226 = sbr.rel (%p1224) target = $region90
      $region89: #{pythiaseek_attention_forward.1} parent=5 // pred_region
        %s1227 = ssub.s32 %s15, 2
        // Predicated region
        $region91: #{pythiaseek_attention_forward.1} parent=89 // pred_check
          %p1228 = pneg %p185
        $region92: #{pythiaseek_attention_forward.1} parent=89 // pred_check_branch
          %1230 = sbr.rel (%p1228) target = $region94
        $region93: #{pythiaseek_attention_forward.1} parent=89 // pred_region
          %s1231 = sand.u32 %s170, 1
          %s1232 = scalar_lea.sflag [#allocation4], %s1231
          %s1233 = sand.u32 %s170, 1
          %s1234 = smul.addr %s1233, 8
          %s1235 = scalar_lea.vmem [#allocation3], %s1234
          %1236 = dma.done %s1232, 128
        $region94: #{pythiaseek_attention_forward.1} parent=89 // pred_fallthru
          _
      $region90: #{pythiaseek_attention_forward.1} parent=5 // pred_fallthru
        _
    $region6: #{pythiaseek_attention_forward.1} parent=1 // loop_footer
      %s19 = sadd.s32 1, %s15
    $region7: #{pythiaseek_attention_forward.1} parent=1 // loop_footer_branch
      %14 = sbr.rel target = $region3
    $region8: #{pythiaseek_attention_forward.1} parent=1 // loop_exit
      _
    %1237 = vsyncpa [#allocation4], 1
    %s1238 = scalar_lea.sflag [#allocation4], 1
    %1239 = vsyncpa %s1238, 1

</llo_original>
